<compile_context>
chip_gen: v7x
topology: tpu7x:2x2x1
jax: 0.10.0
libtpu: 0.0.40
codegen_flags: <defaults>
</compile_context>

<pallas_src>
import jax
import jax.numpy as jnp
from jax import lax
from jax.experimental import pallas as pl
from jax.experimental.pallas import tpu as pltpu

LANES = 128
SUBLANES = 8


def conv1x1_relu_kernel(x_ref, w_ref, b_ref, o_ref):
    """Fused 1x1-conv + bias + out-of-place ReLU on one spatial tile.

    x_ref: (1, C_in,  TR, 128)  VMEM  input tile  (channel-major, lane-dense)
    w_ref: (C_out, C_in)        SMEM  conv weight (scalar reads)
    b_ref: (C_out,)             SMEM  conv bias   (scalar reads)
    o_ref: (1, C_out, TR, 128)  VMEM  output tile
    """
    c_in = x_ref.shape[1]
    c_out = o_ref.shape[1]
    tr = x_ref.shape[2]
    n_strips = tr // SUBLANES  # TR is always a multiple of 8

    # Hoist all SMEM scalar reads once, outside the strip loop (avoids
    # re-issuing ~40 sld + broadcasts per strip iteration).
    w = [[w_ref[co, ci] for ci in range(c_in)] for co in range(c_out)]
    b = [b_ref[co] for co in range(c_out)]

    def strip(r, carry):
        off = pl.multiple_of(r * SUBLANES, SUBLANES)
        # 4 live input vregs per strip + 1 accumulator at a time -> no spills.
        xs = [x_ref[0, ci, pl.ds(off, SUBLANES), :] for ci in range(c_in)]
        for co in range(c_out):
            acc = xs[0] * w[co][0]
            for ci in range(1, c_in):
                acc = acc + xs[ci] * w[co][ci]
            acc = acc + b[co]
            # out-of-place ReLU (the whole point of NoInplaceReLU)
            o_ref[0, co, pl.ds(off, SUBLANES), :] = jnp.maximum(
                acc, 0.0).astype(o_ref.dtype)
        return carry

    lax.fori_loop(0, n_strips, strip, 0, unroll=2)


def _pick_tile_rows(rows: int) -> int:
    """Largest (8,128)-aligned row tile that still leaves >= 2 spatial grid
    steps (pipelining + 2-TC balance); fall back to the largest divisor."""
    candidates = (1024, 512, 256, 128, 64, 32, 16, 8)
    for cand in candidates:
        if rows % cand == 0 and rows // cand >= 2:
            return cand
    for cand in candidates:
        if rows % cand == 0:
            return cand
    return SUBLANES  # unreachable: rows is always a multiple of 8


def _conv1x1_relu_reference(x_nchw, weight, bias):
    """Plain-XLA forward of the same inner model (also the tiny-size path)."""
    y = jnp.einsum("nchw,oc->nohw", x_nchw, weight,
                   precision=lax.Precision.HIGHEST)
    return jnp.maximum(y + bias[None, :, None, None], 0.0)


def no_inplace_relu_forward(x_nchw, weight, bias):
    """Forward of NoInplaceReLU wrapping a 1x1-conv + ReLU inner model.

    x_nchw: (N, C_in, H, W) float32
    weight: (C_out, C_in)   float32  (1x1 conv weight, squeezed)
    bias:   (C_out,)        float32
    returns (N, C_out, H, W) float32
    """
    N, C_in, H, W = x_nchw.shape
    C_out = weight.shape[0]
    HW = H * W

    rows_raw = (HW + LANES - 1) // LANES
    if rows_raw < SUBLANES:
        # Tiny activations: padding + custom-call fixed costs dominate; the
        # XLA fusion wins, so don't go through Pallas at all.
        return _conv1x1_relu_reference(x_nchw, weight, bias)

    # Pad the flattened spatial axis so it maps to an (8,128)-aligned slab.
    # When HW is already a multiple of 8*128 this path is pure reshapes
    # (no pad, no post-slice -> no extra HBM passes).
    rows = ((rows_raw + SUBLANES - 1) // SUBLANES) * SUBLANES
    hw_pad = rows * LANES
    x3 = x_nchw.reshape(N, C_in, HW)
    if hw_pad != HW:
        # TODO(synk): handle the ragged tail with an in-kernel masked store to
        # avoid this extra XLA pad/slice pass when HW % 1024 != 0.
        x3 = jnp.pad(x3, ((0, 0), (0, 0), (0, hw_pad - HW)))
    x4 = x3.reshape(N, C_in, rows, LANES)

    tr = _pick_tile_rows(rows)
    grid = (N, rows // tr)

    itemsize = jnp.dtype(x_nchw.dtype).itemsize
    cost = pl.CostEstimate(
        flops=2 * N * hw_pad * C_in * C_out,
        transcendentals=0,
        bytes_accessed=(N * C_in * hw_pad + N * C_out * hw_pad) * itemsize
        + weight.size * jnp.dtype(weight.dtype).itemsize
        + bias.size * jnp.dtype(bias.dtype).itemsize,
    )

    # Double-buffered footprint: 2 * (C_in + C_out) * tr * 128 * itemsize
    # (~12 MiB at tr=1024) + headroom; capped well under v7x's 64 MiB VMEM.
    vmem_bytes = min(2 * (C_in + C_out) * tr * LANES * itemsize + (4 << 20),
                     32 << 20)

    out4 = pl.pallas_call(
        conv1x1_relu_kernel,
        out_shape=jax.ShapeDtypeStruct((N, C_out, rows, LANES), x_nchw.dtype),
        grid=grid,
        in_specs=[
            pl.BlockSpec((1, C_in, tr, LANES), lambda n, j: (n, 0, j, 0)),
            pl.BlockSpec(memory_space=pltpu.MemorySpace.SMEM),
            pl.BlockSpec(memory_space=pltpu.MemorySpace.SMEM),
        ],
        out_specs=pl.BlockSpec((1, C_out, tr, LANES),
                               lambda n, j: (n, 0, j, 0)),
        compiler_params=pltpu.CompilerParams(
            dimension_semantics=("parallel", "parallel"),
            vmem_limit_bytes=vmem_bytes,
        ),
        cost_estimate=cost,
    )(x4, weight, bias)

    if hw_pad != HW:
        out = out4.reshape(N, C_out, hw_pad)[:, :, :HW]
    else:
        out = out4.reshape(N, C_out, hw_pad)
    return out.reshape(N, C_out, H, W)


if __name__ == "__main__":
    key = jax.random.PRNGKey(0)
    k_x, k_w, k_b, k_x2 = jax.random.split(key, 4)

    C_in, C_out = 4, 8
    # deterministic synthetic parameters for the inner model
    weight = jax.random.normal(k_w, (C_out, C_in), dtype=jnp.float32) * 0.1
    bias = jax.random.normal(k_b, (C_out,), dtype=jnp.float32) * 0.1

    fwd = jax.jit(no_inplace_relu_forward)

    # Pallas path: (8,128)-aligned spatial slab -> grid=(2, 2), pipelined.
    N, H, W = 2, 64, 64
    x_big = jax.random.normal(k_x, (N, C_in, H, W), dtype=jnp.float32)
    out_big = jax.block_until_ready(fwd(x_big, weight, bias))
    ref_big = _conv1x1_relu_reference(x_big, weight, bias)
    assert out_big.shape == (N, C_out, H, W)
    assert jnp.allclose(out_big, ref_big, atol=1e-5, rtol=1e-5)

    # Tiny-activation path (rows < 8 sublanes): dispatches to plain XLA.
    x_small = jax.random.normal(k_x2, (2, C_in, 16, 16), dtype=jnp.float32)
    out_small = jax.block_until_ready(fwd(x_small, weight, bias))
    ref_small = _conv1x1_relu_reference(x_small, weight, bias)
    assert out_small.shape == (2, C_out, 16, 16)
    assert jnp.allclose(out_small, ref_small, atol=1e-5, rtol=1e-5)

    print("KERNEL_OK")
</pallas_src>

<mosaic_0001>
module attributes {stable_mosaic.version = 11 : i64} {
  func.func @conv1x1_relu_kernel(%arg0: i32, %arg1: i32, %arg2: memref<1x4x16x128xf32, #tpu.memory_space<vmem>>, %arg3: memref<8x4xf32, #tpu.memory_space<smem>>, %arg4: memref<8xf32, #tpu.memory_space<smem>>, %arg5: memref<1x8x16x128xf32, #tpu.memory_space<vmem>>) attributes {dimension_semantics = [#tpu.dimension_semantics<parallel>, #tpu.dimension_semantics<parallel>], iteration_bounds = array<i64: 2, 2>, scalar_prefetch = 0 : i64, scratch_operands = 0 : i64, tpu.core_type = #tpu.core_type<tc>, window_params = [{transform_indices = @transform_0, window_bounds = array<i64: 1, 4, 16, 128>}, {transform_indices = @transform_1, window_bounds = array<i64: 8, 4>}, {transform_indices = @transform_2, window_bounds = array<i64: 8>}, {transform_indices = @transform_3, window_bounds = array<i64: 1, 8, 16, 128>}]} {
    %c0 = arith.constant 0 : index
    %c0_0 = arith.constant 0 : index
    %0 = memref.load %arg3[%c0, %c0_0] : memref<8x4xf32, #tpu.memory_space<smem>>
    %c0_1 = arith.constant 0 : index
    %c1 = arith.constant 1 : index
    %1 = memref.load %arg3[%c0_1, %c1] : memref<8x4xf32, #tpu.memory_space<smem>>
    %c0_2 = arith.constant 0 : index
    %c2 = arith.constant 2 : index
    %2 = memref.load %arg3[%c0_2, %c2] : memref<8x4xf32, #tpu.memory_space<smem>>
    %c0_3 = arith.constant 0 : index
    %c3 = arith.constant 3 : index
    %3 = memref.load %arg3[%c0_3, %c3] : memref<8x4xf32, #tpu.memory_space<smem>>
    %c1_4 = arith.constant 1 : index
    %c0_5 = arith.constant 0 : index
    %4 = memref.load %arg3[%c1_4, %c0_5] : memref<8x4xf32, #tpu.memory_space<smem>>
    %c1_6 = arith.constant 1 : index
    %c1_7 = arith.constant 1 : index
    %5 = memref.load %arg3[%c1_6, %c1_7] : memref<8x4xf32, #tpu.memory_space<smem>>
    %c1_8 = arith.constant 1 : index
    %c2_9 = arith.constant 2 : index
    %6 = memref.load %arg3[%c1_8, %c2_9] : memref<8x4xf32, #tpu.memory_space<smem>>
    %c1_10 = arith.constant 1 : index
    %c3_11 = arith.constant 3 : index
    %7 = memref.load %arg3[%c1_10, %c3_11] : memref<8x4xf32, #tpu.memory_space<smem>>
    %c2_12 = arith.constant 2 : index
    %c0_13 = arith.constant 0 : index
    %8 = memref.load %arg3[%c2_12, %c0_13] : memref<8x4xf32, #tpu.memory_space<smem>>
    %c2_14 = arith.constant 2 : index
    %c1_15 = arith.constant 1 : index
    %9 = memref.load %arg3[%c2_14, %c1_15] : memref<8x4xf32, #tpu.memory_space<smem>>
    %c2_16 = arith.constant 2 : index
    %c2_17 = arith.constant 2 : index
    %10 = memref.load %arg3[%c2_16, %c2_17] : memref<8x4xf32, #tpu.memory_space<smem>>
    %c2_18 = arith.constant 2 : index
    %c3_19 = arith.constant 3 : index
    %11 = memref.load %arg3[%c2_18, %c3_19] : memref<8x4xf32, #tpu.memory_space<smem>>
    %c3_20 = arith.constant 3 : index
    %c0_21 = arith.constant 0 : index
    %12 = memref.load %arg3[%c3_20, %c0_21] : memref<8x4xf32, #tpu.memory_space<smem>>
    %c3_22 = arith.constant 3 : index
    %c1_23 = arith.constant 1 : index
    %13 = memref.load %arg3[%c3_22, %c1_23] : memref<8x4xf32, #tpu.memory_space<smem>>
    %c3_24 = arith.constant 3 : index
    %c2_25 = arith.constant 2 : index
    %14 = memref.load %arg3[%c3_24, %c2_25] : memref<8x4xf32, #tpu.memory_space<smem>>
    %c3_26 = arith.constant 3 : index
    %c3_27 = arith.constant 3 : index
    %15 = memref.load %arg3[%c3_26, %c3_27] : memref<8x4xf32, #tpu.memory_space<smem>>
    %c4 = arith.constant 4 : index
    %c0_28 = arith.constant 0 : index
    %16 = memref.load %arg3[%c4, %c0_28] : memref<8x4xf32, #tpu.memory_space<smem>>
    %c4_29 = arith.constant 4 : index
    %c1_30 = arith.constant 1 : index
    %17 = memref.load %arg3[%c4_29, %c1_30] : memref<8x4xf32, #tpu.memory_space<smem>>
    %c4_31 = arith.constant 4 : index
    %c2_32 = arith.constant 2 : index
    %18 = memref.load %arg3[%c4_31, %c2_32] : memref<8x4xf32, #tpu.memory_space<smem>>
    %c4_33 = arith.constant 4 : index
    %c3_34 = arith.constant 3 : index
    %19 = memref.load %arg3[%c4_33, %c3_34] : memref<8x4xf32, #tpu.memory_space<smem>>
    %c5 = arith.constant 5 : index
    %c0_35 = arith.constant 0 : index
    %20 = memref.load %arg3[%c5, %c0_35] : memref<8x4xf32, #tpu.memory_space<smem>>
    %c5_36 = arith.constant 5 : index
    %c1_37 = arith.constant 1 : index
    %21 = memref.load %arg3[%c5_36, %c1_37] : memref<8x4xf32, #tpu.memory_space<smem>>
    %c5_38 = arith.constant 5 : index
    %c2_39 = arith.constant 2 : index
    %22 = memref.load %arg3[%c5_38, %c2_39] : memref<8x4xf32, #tpu.memory_space<smem>>
    %c5_40 = arith.constant 5 : index
    %c3_41 = arith.constant 3 : index
    %23 = memref.load %arg3[%c5_40, %c3_41] : memref<8x4xf32, #tpu.memory_space<smem>>
    %c6 = arith.constant 6 : index
    %c0_42 = arith.constant 0 : index
    %24 = memref.load %arg3[%c6, %c0_42] : memref<8x4xf32, #tpu.memory_space<smem>>
    %c6_43 = arith.constant 6 : index
    %c1_44 = arith.constant 1 : index
    %25 = memref.load %arg3[%c6_43, %c1_44] : memref<8x4xf32, #tpu.memory_space<smem>>
    %c6_45 = arith.constant 6 : index
    %c2_46 = arith.constant 2 : index
    %26 = memref.load %arg3[%c6_45, %c2_46] : memref<8x4xf32, #tpu.memory_space<smem>>
    %c6_47 = arith.constant 6 : index
    %c3_48 = arith.constant 3 : index
    %27 = memref.load %arg3[%c6_47, %c3_48] : memref<8x4xf32, #tpu.memory_space<smem>>
    %c7 = arith.constant 7 : index
    %c0_49 = arith.constant 0 : index
    %28 = memref.load %arg3[%c7, %c0_49] : memref<8x4xf32, #tpu.memory_space<smem>>
    %c7_50 = arith.constant 7 : index
    %c1_51 = arith.constant 1 : index
    %29 = memref.load %arg3[%c7_50, %c1_51] : memref<8x4xf32, #tpu.memory_space<smem>>
    %c7_52 = arith.constant 7 : index
    %c2_53 = arith.constant 2 : index
    %30 = memref.load %arg3[%c7_52, %c2_53] : memref<8x4xf32, #tpu.memory_space<smem>>
    %c7_54 = arith.constant 7 : index
    %c3_55 = arith.constant 3 : index
    %31 = memref.load %arg3[%c7_54, %c3_55] : memref<8x4xf32, #tpu.memory_space<smem>>
    %c0_56 = arith.constant 0 : index
    %32 = memref.load %arg4[%c0_56] : memref<8xf32, #tpu.memory_space<smem>>
    %c1_57 = arith.constant 1 : index
    %33 = memref.load %arg4[%c1_57] : memref<8xf32, #tpu.memory_space<smem>>
    %c2_58 = arith.constant 2 : index
    %34 = memref.load %arg4[%c2_58] : memref<8xf32, #tpu.memory_space<smem>>
    %c3_59 = arith.constant 3 : index
    %35 = memref.load %arg4[%c3_59] : memref<8xf32, #tpu.memory_space<smem>>
    %c4_60 = arith.constant 4 : index
    %36 = memref.load %arg4[%c4_60] : memref<8xf32, #tpu.memory_space<smem>>
    %c5_61 = arith.constant 5 : index
    %37 = memref.load %arg4[%c5_61] : memref<8xf32, #tpu.memory_space<smem>>
    %c6_62 = arith.constant 6 : index
    %38 = memref.load %arg4[%c6_62] : memref<8xf32, #tpu.memory_space<smem>>
    %c7_63 = arith.constant 7 : index
    %39 = memref.load %arg4[%c7_63] : memref<8xf32, #tpu.memory_space<smem>>
    %c0_i32 = arith.constant 0 : i32
    %c8_i32 = arith.constant 8 : i32
    %40 = arith.muli %c0_i32, %c8_i32 : i32
    %41 = tpu.assume_multiple %40, 8 : i32
    %c0_64 = arith.constant 0 : index
    %c0_65 = arith.constant 0 : index
    %42 = arith.index_cast %41 : i32 to index
    %c0_66 = arith.constant 0 : index
    %43 = vector.load %arg2[%c0_64, %c0_65, %42, %c0_66] : memref<1x4x16x128xf32, #tpu.memory_space<vmem>>, vector<1x1x8x128xf32>
    %44 = vector.shape_cast %43 : vector<1x1x8x128xf32> to vector<8x128xf32>
    %c0_67 = arith.constant 0 : index
    %c1_68 = arith.constant 1 : index
    %45 = arith.index_cast %41 : i32 to index
    %c0_69 = arith.constant 0 : index
    %46 = vector.load %arg2[%c0_67, %c1_68, %45, %c0_69] : memref<1x4x16x128xf32, #tpu.memory_space<vmem>>, vector<1x1x8x128xf32>
    %47 = vector.shape_cast %46 : vector<1x1x8x128xf32> to vector<8x128xf32>
    %c0_70 = arith.constant 0 : index
    %c2_71 = arith.constant 2 : index
    %48 = arith.index_cast %41 : i32 to index
    %c0_72 = arith.constant 0 : index
    %49 = vector.load %arg2[%c0_70, %c2_71, %48, %c0_72] : memref<1x4x16x128xf32, #tpu.memory_space<vmem>>, vector<1x1x8x128xf32>
    %50 = vector.shape_cast %49 : vector<1x1x8x128xf32> to vector<8x128xf32>
    %c0_73 = arith.constant 0 : index
    %c3_74 = arith.constant 3 : index
    %51 = arith.index_cast %41 : i32 to index
    %c0_75 = arith.constant 0 : index
    %52 = vector.load %arg2[%c0_73, %c3_74, %51, %c0_75] : memref<1x4x16x128xf32, #tpu.memory_space<vmem>>, vector<1x1x8x128xf32>
    %53 = vector.shape_cast %52 : vector<1x1x8x128xf32> to vector<8x128xf32>
    %54 = vector.broadcast %0 : f32 to vector<8x128xf32>
    %55 = arith.mulf %44, %54 : vector<8x128xf32>
    %56 = vector.broadcast %1 : f32 to vector<8x128xf32>
    %57 = arith.mulf %47, %56 : vector<8x128xf32>
    %58 = arith.addf %55, %57 : vector<8x128xf32>
    %59 = vector.broadcast %2 : f32 to vector<8x128xf32>
    %60 = arith.mulf %50, %59 : vector<8x128xf32>
    %61 = arith.addf %58, %60 : vector<8x128xf32>
    %62 = vector.broadcast %3 : f32 to vector<8x128xf32>
    %63 = arith.mulf %53, %62 : vector<8x128xf32>
    %64 = arith.addf %61, %63 : vector<8x128xf32>
    %65 = vector.broadcast %32 : f32 to vector<8x128xf32>
    %66 = arith.addf %64, %65 : vector<8x128xf32>
    %cst = arith.constant 0.000000e+00 : f32
    %67 = vector.broadcast %cst : f32 to vector<8x128xf32>
    %68 = arith.maximumf %66, %67 : vector<8x128xf32>
    %c0_76 = arith.constant 0 : index
    %c0_77 = arith.constant 0 : index
    %69 = arith.index_cast %41 : i32 to index
    %c0_78 = arith.constant 0 : index
    %70 = vector.load %arg5[%c0_76, %c0_77, %69, %c0_78] : memref<1x8x16x128xf32, #tpu.memory_space<vmem>>, vector<1x1x8x128xf32>
    %71 = vector.shape_cast %70 : vector<1x1x8x128xf32> to vector<8x128xf32>
    %72 = vector.shape_cast %68 : vector<8x128xf32> to vector<1x1x8x128xf32>
    tpu.vector_store %arg5[%c0_76, %c0_77, %69, %c0_78], %72 {strides = array<i32>} : memref<1x8x16x128xf32, #tpu.memory_space<vmem>>, vector<1x1x8x128xf32>,
    %73 = vector.broadcast %4 : f32 to vector<8x128xf32>
    %74 = arith.mulf %44, %73 : vector<8x128xf32>
    %75 = vector.broadcast %5 : f32 to vector<8x128xf32>
    %76 = arith.mulf %47, %75 : vector<8x128xf32>
    %77 = arith.addf %74, %76 : vector<8x128xf32>
    %78 = vector.broadcast %6 : f32 to vector<8x128xf32>
    %79 = arith.mulf %50, %78 : vector<8x128xf32>
    %80 = arith.addf %77, %79 : vector<8x128xf32>
    %81 = vector.broadcast %7 : f32 to vector<8x128xf32>
    %82 = arith.mulf %53, %81 : vector<8x128xf32>
    %83 = arith.addf %80, %82 : vector<8x128xf32>
    %84 = vector.broadcast %33 : f32 to vector<8x128xf32>
    %85 = arith.addf %83, %84 : vector<8x128xf32>
    %cst_79 = arith.constant 0.000000e+00 : f32
    %86 = vector.broadcast %cst_79 : f32 to vector<8x128xf32>
    %87 = arith.maximumf %85, %86 : vector<8x128xf32>
    %c0_80 = arith.constant 0 : index
    %c1_81 = arith.constant 1 : index
    %88 = arith.index_cast %41 : i32 to index
    %c0_82 = arith.constant 0 : index
    %89 = vector.load %arg5[%c0_80, %c1_81, %88, %c0_82] : memref<1x8x16x128xf32, #tpu.memory_space<vmem>>, vector<1x1x8x128xf32>
    %90 = vector.shape_cast %89 : vector<1x1x8x128xf32> to vector<8x128xf32>
    %91 = vector.shape_cast %87 : vector<8x128xf32> to vector<1x1x8x128xf32>
    tpu.vector_store %arg5[%c0_80, %c1_81, %88, %c0_82], %91 {strides = array<i32>} : memref<1x8x16x128xf32, #tpu.memory_space<vmem>>, vector<1x1x8x128xf32>,
    %92 = vector.broadcast %8 : f32 to vector<8x128xf32>
    %93 = arith.mulf %44, %92 : vector<8x128xf32>
    %94 = vector.broadcast %9 : f32 to vector<8x128xf32>
    %95 = arith.mulf %47, %94 : vector<8x128xf32>
    %96 = arith.addf %93, %95 : vector<8x128xf32>
    %97 = vector.broadcast %10 : f32 to vector<8x128xf32>
    %98 = arith.mulf %50, %97 : vector<8x128xf32>
    %99 = arith.addf %96, %98 : vector<8x128xf32>
    %100 = vector.broadcast %11 : f32 to vector<8x128xf32>
    %101 = arith.mulf %53, %100 : vector<8x128xf32>
    %102 = arith.addf %99, %101 : vector<8x128xf32>
    %103 = vector.broadcast %34 : f32 to vector<8x128xf32>
    %104 = arith.addf %102, %103 : vector<8x128xf32>
    %cst_83 = arith.constant 0.000000e+00 : f32
    %105 = vector.broadcast %cst_83 : f32 to vector<8x128xf32>
    %106 = arith.maximumf %104, %105 : vector<8x128xf32>
    %c0_84 = arith.constant 0 : index
    %c2_85 = arith.constant 2 : index
    %107 = arith.index_cast %41 : i32 to index
    %c0_86 = arith.constant 0 : index
    %108 = vector.load %arg5[%c0_84, %c2_85, %107, %c0_86] : memref<1x8x16x128xf32, #tpu.memory_space<vmem>>, vector<1x1x8x128xf32>
    %109 = vector.shape_cast %108 : vector<1x1x8x128xf32> to vector<8x128xf32>
    %110 = vector.shape_cast %106 : vector<8x128xf32> to vector<1x1x8x128xf32>
    tpu.vector_store %arg5[%c0_84, %c2_85, %107, %c0_86], %110 {strides = array<i32>} : memref<1x8x16x128xf32, #tpu.memory_space<vmem>>, vector<1x1x8x128xf32>,
    %111 = vector.broadcast %12 : f32 to vector<8x128xf32>
    %112 = arith.mulf %44, %111 : vector<8x128xf32>
    %113 = vector.broadcast %13 : f32 to vector<8x128xf32>
    %114 = arith.mulf %47, %113 : vector<8x128xf32>
    %115 = arith.addf %112, %114 : vector<8x128xf32>
    %116 = vector.broadcast %14 : f32 to vector<8x128xf32>
    %117 = arith.mulf %50, %116 : vector<8x128xf32>
    %118 = arith.addf %115, %117 : vector<8x128xf32>
    %119 = vector.broadcast %15 : f32 to vector<8x128xf32>
    %120 = arith.mulf %53, %119 : vector<8x128xf32>
    %121 = arith.addf %118, %120 : vector<8x128xf32>
    %122 = vector.broadcast %35 : f32 to vector<8x128xf32>
    %123 = arith.addf %121, %122 : vector<8x128xf32>
    %cst_87 = arith.constant 0.000000e+00 : f32
    %124 = vector.broadcast %cst_87 : f32 to vector<8x128xf32>
    %125 = arith.maximumf %123, %124 : vector<8x128xf32>
    %c0_88 = arith.constant 0 : index
    %c3_89 = arith.constant 3 : index
    %126 = arith.index_cast %41 : i32 to index
    %c0_90 = arith.constant 0 : index
    %127 = vector.load %arg5[%c0_88, %c3_89, %126, %c0_90] : memref<1x8x16x128xf32, #tpu.memory_space<vmem>>, vector<1x1x8x128xf32>
    %128 = vector.shape_cast %127 : vector<1x1x8x128xf32> to vector<8x128xf32>
    %129 = vector.shape_cast %125 : vector<8x128xf32> to vector<1x1x8x128xf32>
    tpu.vector_store %arg5[%c0_88, %c3_89, %126, %c0_90], %129 {strides = array<i32>} : memref<1x8x16x128xf32, #tpu.memory_space<vmem>>, vector<1x1x8x128xf32>,
    %130 = vector.broadcast %16 : f32 to vector<8x128xf32>
    %131 = arith.mulf %44, %130 : vector<8x128xf32>
    %132 = vector.broadcast %17 : f32 to vector<8x128xf32>
    %133 = arith.mulf %47, %132 : vector<8x128xf32>
    %134 = arith.addf %131, %133 : vector<8x128xf32>
    %135 = vector.broadcast %18 : f32 to vector<8x128xf32>
    %136 = arith.mulf %50, %135 : vector<8x128xf32>
    %137 = arith.addf %134, %136 : vector<8x128xf32>
    %138 = vector.broadcast %19 : f32 to vector<8x128xf32>
    %139 = arith.mulf %53, %138 : vector<8x128xf32>
    %140 = arith.addf %137, %139 : vector<8x128xf32>
    %141 = vector.broadcast %36 : f32 to vector<8x128xf32>
    %142 = arith.addf %140, %141 : vector<8x128xf32>
    %cst_91 = arith.constant 0.000000e+00 : f32
    %143 = vector.broadcast %cst_91 : f32 to vector<8x128xf32>
    %144 = arith.maximumf %142, %143 : vector<8x128xf32>
    %c0_92 = arith.constant 0 : index
    %c4_93 = arith.constant 4 : index
    %145 = arith.index_cast %41 : i32 to index
    %c0_94 = arith.constant 0 : index
    %146 = vector.load %arg5[%c0_92, %c4_93, %145, %c0_94] : memref<1x8x16x128xf32, #tpu.memory_space<vmem>>, vector<1x1x8x128xf32>
    %147 = vector.shape_cast %146 : vector<1x1x8x128xf32> to vector<8x128xf32>
    %148 = vector.shape_cast %144 : vector<8x128xf32> to vector<1x1x8x128xf32>
    tpu.vector_store %arg5[%c0_92, %c4_93, %145, %c0_94], %148 {strides = array<i32>} : memref<1x8x16x128xf32, #tpu.memory_space<vmem>>, vector<1x1x8x128xf32>,
    %149 = vector.broadcast %20 : f32 to vector<8x128xf32>
    %150 = arith.mulf %44, %149 : vector<8x128xf32>
    %151 = vector.broadcast %21 : f32 to vector<8x128xf32>
    %152 = arith.mulf %47, %151 : vector<8x128xf32>
    %153 = arith.addf %150, %152 : vector<8x128xf32>
    %154 = vector.broadcast %22 : f32 to vector<8x128xf32>
    %155 = arith.mulf %50, %154 : vector<8x128xf32>
    %156 = arith.addf %153, %155 : vector<8x128xf32>
    %157 = vector.broadcast %23 : f32 to vector<8x128xf32>
    %158 = arith.mulf %53, %157 : vector<8x128xf32>
    %159 = arith.addf %156, %158 : vector<8x128xf32>
    %160 = vector.broadcast %37 : f32 to vector<8x128xf32>
    %161 = arith.addf %159, %160 : vector<8x128xf32>
    %cst_95 = arith.constant 0.000000e+00 : f32
    %162 = vector.broadcast %cst_95 : f32 to vector<8x128xf32>
    %163 = arith.maximumf %161, %162 : vector<8x128xf32>
    %c0_96 = arith.constant 0 : index
    %c5_97 = arith.constant 5 : index
    %164 = arith.index_cast %41 : i32 to index
    %c0_98 = arith.constant 0 : index
    %165 = vector.load %arg5[%c0_96, %c5_97, %164, %c0_98] : memref<1x8x16x128xf32, #tpu.memory_space<vmem>>, vector<1x1x8x128xf32>
    %166 = vector.shape_cast %165 : vector<1x1x8x128xf32> to vector<8x128xf32>
    %167 = vector.shape_cast %163 : vector<8x128xf32> to vector<1x1x8x128xf32>
    tpu.vector_store %arg5[%c0_96, %c5_97, %164, %c0_98], %167 {strides = array<i32>} : memref<1x8x16x128xf32, #tpu.memory_space<vmem>>, vector<1x1x8x128xf32>,
    %168 = vector.broadcast %24 : f32 to vector<8x128xf32>
    %169 = arith.mulf %44, %168 : vector<8x128xf32>
    %170 = vector.broadcast %25 : f32 to vector<8x128xf32>
    %171 = arith.mulf %47, %170 : vector<8x128xf32>
    %172 = arith.addf %169, %171 : vector<8x128xf32>
    %173 = vector.broadcast %26 : f32 to vector<8x128xf32>
    %174 = arith.mulf %50, %173 : vector<8x128xf32>
    %175 = arith.addf %172, %174 : vector<8x128xf32>
    %176 = vector.broadcast %27 : f32 to vector<8x128xf32>
    %177 = arith.mulf %53, %176 : vector<8x128xf32>
    %178 = arith.addf %175, %177 : vector<8x128xf32>
    %179 = vector.broadcast %38 : f32 to vector<8x128xf32>
    %180 = arith.addf %178, %179 : vector<8x128xf32>
    %cst_99 = arith.constant 0.000000e+00 : f32
    %181 = vector.broadcast %cst_99 : f32 to vector<8x128xf32>
    %182 = arith.maximumf %180, %181 : vector<8x128xf32>
    %c0_100 = arith.constant 0 : index
    %c6_101 = arith.constant 6 : index
    %183 = arith.index_cast %41 : i32 to index
    %c0_102 = arith.constant 0 : index
    %184 = vector.load %arg5[%c0_100, %c6_101, %183, %c0_102] : memref<1x8x16x128xf32, #tpu.memory_space<vmem>>, vector<1x1x8x128xf32>
    %185 = vector.shape_cast %184 : vector<1x1x8x128xf32> to vector<8x128xf32>
    %186 = vector.shape_cast %182 : vector<8x128xf32> to vector<1x1x8x128xf32>
    tpu.vector_store %arg5[%c0_100, %c6_101, %183, %c0_102], %186 {strides = array<i32>} : memref<1x8x16x128xf32, #tpu.memory_space<vmem>>, vector<1x1x8x128xf32>,
    %187 = vector.broadcast %28 : f32 to vector<8x128xf32>
    %188 = arith.mulf %44, %187 : vector<8x128xf32>
    %189 = vector.broadcast %29 : f32 to vector<8x128xf32>
    %190 = arith.mulf %47, %189 : vector<8x128xf32>
    %191 = arith.addf %188, %190 : vector<8x128xf32>
    %192 = vector.broadcast %30 : f32 to vector<8x128xf32>
    %193 = arith.mulf %50, %192 : vector<8x128xf32>
    %194 = arith.addf %191, %193 : vector<8x128xf32>
    %195 = vector.broadcast %31 : f32 to vector<8x128xf32>
    %196 = arith.mulf %53, %195 : vector<8x128xf32>
    %197 = arith.addf %194, %196 : vector<8x128xf32>
    %198 = vector.broadcast %39 : f32 to vector<8x128xf32>
    %199 = arith.addf %197, %198 : vector<8x128xf32>
    %cst_103 = arith.constant 0.000000e+00 : f32
    %200 = vector.broadcast %cst_103 : f32 to vector<8x128xf32>
    %201 = arith.maximumf %199, %200 : vector<8x128xf32>
    %c0_104 = arith.constant 0 : index
    %c7_105 = arith.constant 7 : index
    %202 = arith.index_cast %41 : i32 to index
    %c0_106 = arith.constant 0 : index
    %203 = vector.load %arg5[%c0_104, %c7_105, %202, %c0_106] : memref<1x8x16x128xf32, #tpu.memory_space<vmem>>, vector<1x1x8x128xf32>
    %204 = vector.shape_cast %203 : vector<1x1x8x128xf32> to vector<8x128xf32>
    %205 = vector.shape_cast %201 : vector<8x128xf32> to vector<1x1x8x128xf32>
    tpu.vector_store %arg5[%c0_104, %c7_105, %202, %c0_106], %205 {strides = array<i32>} : memref<1x8x16x128xf32, #tpu.memory_space<vmem>>, vector<1x1x8x128xf32>,
    %c1_i32 = arith.constant 1 : i32
    %c8_i32_107 = arith.constant 8 : i32
    %206 = arith.muli %c1_i32, %c8_i32_107 : i32
    %207 = tpu.assume_multiple %206, 8 : i32
    %c0_108 = arith.constant 0 : index
    %c0_109 = arith.constant 0 : index
    %208 = arith.index_cast %207 : i32 to index
    %c0_110 = arith.constant 0 : index
    %209 = vector.load %arg2[%c0_108, %c0_109, %208, %c0_110] : memref<1x4x16x128xf32, #tpu.memory_space<vmem>>, vector<1x1x8x128xf32>
    %210 = vector.shape_cast %209 : vector<1x1x8x128xf32> to vector<8x128xf32>
    %c0_111 = arith.constant 0 : index
    %c1_112 = arith.constant 1 : index
    %211 = arith.index_cast %207 : i32 to index
    %c0_113 = arith.constant 0 : index
    %212 = vector.load %arg2[%c0_111, %c1_112, %211, %c0_113] : memref<1x4x16x128xf32, #tpu.memory_space<vmem>>, vector<1x1x8x128xf32>
    %213 = vector.shape_cast %212 : vector<1x1x8x128xf32> to vector<8x128xf32>
    %c0_114 = arith.constant 0 : index
    %c2_115 = arith.constant 2 : index
    %214 = arith.index_cast %207 : i32 to index
    %c0_116 = arith.constant 0 : index
    %215 = vector.load %arg2[%c0_114, %c2_115, %214, %c0_116] : memref<1x4x16x128xf32, #tpu.memory_space<vmem>>, vector<1x1x8x128xf32>
    %216 = vector.shape_cast %215 : vector<1x1x8x128xf32> to vector<8x128xf32>
    %c0_117 = arith.constant 0 : index
    %c3_118 = arith.constant 3 : index
    %217 = arith.index_cast %207 : i32 to index
    %c0_119 = arith.constant 0 : index
    %218 = vector.load %arg2[%c0_117, %c3_118, %217, %c0_119] : memref<1x4x16x128xf32, #tpu.memory_space<vmem>>, vector<1x1x8x128xf32>
    %219 = vector.shape_cast %218 : vector<1x1x8x128xf32> to vector<8x128xf32>
    %220 = vector.broadcast %0 : f32 to vector<8x128xf32>
    %221 = arith.mulf %210, %220 : vector<8x128xf32>
    %222 = vector.broadcast %1 : f32 to vector<8x128xf32>
    %223 = arith.mulf %213, %222 : vector<8x128xf32>
    %224 = arith.addf %221, %223 : vector<8x128xf32>
    %225 = vector.broadcast %2 : f32 to vector<8x128xf32>
    %226 = arith.mulf %216, %225 : vector<8x128xf32>
    %227 = arith.addf %224, %226 : vector<8x128xf32>
    %228 = vector.broadcast %3 : f32 to vector<8x128xf32>
    %229 = arith.mulf %219, %228 : vector<8x128xf32>
    %230 = arith.addf %227, %229 : vector<8x128xf32>
    %231 = vector.broadcast %32 : f32 to vector<8x128xf32>
    %232 = arith.addf %230, %231 : vector<8x128xf32>
    %cst_120 = arith.constant 0.000000e+00 : f32
    %233 = vector.broadcast %cst_120 : f32 to vector<8x128xf32>
    %234 = arith.maximumf %232, %233 : vector<8x128xf32>
    %c0_121 = arith.constant 0 : index
    %c0_122 = arith.constant 0 : index
    %235 = arith.index_cast %207 : i32 to index
    %c0_123 = arith.constant 0 : index
    %236 = vector.load %arg5[%c0_121, %c0_122, %235, %c0_123] : memref<1x8x16x128xf32, #tpu.memory_space<vmem>>, vector<1x1x8x128xf32>
    %237 = vector.shape_cast %236 : vector<1x1x8x128xf32> to vector<8x128xf32>
    %238 = vector.shape_cast %234 : vector<8x128xf32> to vector<1x1x8x128xf32>
    tpu.vector_store %arg5[%c0_121, %c0_122, %235, %c0_123], %238 {strides = array<i32>} : memref<1x8x16x128xf32, #tpu.memory_space<vmem>>, vector<1x1x8x128xf32>,
    %239 = vector.broadcast %4 : f32 to vector<8x128xf32>
    %240 = arith.mulf %210, %239 : vector<8x128xf32>
    %241 = vector.broadcast %5 : f32 to vector<8x128xf32>
    %242 = arith.mulf %213, %241 : vector<8x128xf32>
    %243 = arith.addf %240, %242 : vector<8x128xf32>
    %244 = vector.broadcast %6 : f32 to vector<8x128xf32>
    %245 = arith.mulf %216, %244 : vector<8x128xf32>
    %246 = arith.addf %243, %245 : vector<8x128xf32>
    %247 = vector.broadcast %7 : f32 to vector<8x128xf32>
    %248 = arith.mulf %219, %247 : vector<8x128xf32>
    %249 = arith.addf %246, %248 : vector<8x128xf32>
    %250 = vector.broadcast %33 : f32 to vector<8x128xf32>
    %251 = arith.addf %249, %250 : vector<8x128xf32>
    %cst_124 = arith.constant 0.000000e+00 : f32
    %252 = vector.broadcast %cst_124 : f32 to vector<8x128xf32>
    %253 = arith.maximumf %251, %252 : vector<8x128xf32>
    %c0_125 = arith.constant 0 : index
    %c1_126 = arith.constant 1 : index
    %254 = arith.index_cast %207 : i32 to index
    %c0_127 = arith.constant 0 : index
    %255 = vector.load %arg5[%c0_125, %c1_126, %254, %c0_127] : memref<1x8x16x128xf32, #tpu.memory_space<vmem>>, vector<1x1x8x128xf32>
    %256 = vector.shape_cast %255 : vector<1x1x8x128xf32> to vector<8x128xf32>
    %257 = vector.shape_cast %253 : vector<8x128xf32> to vector<1x1x8x128xf32>
    tpu.vector_store %arg5[%c0_125, %c1_126, %254, %c0_127], %257 {strides = array<i32>} : memref<1x8x16x128xf32, #tpu.memory_space<vmem>>, vector<1x1x8x128xf32>,
    %258 = vector.broadcast %8 : f32 to vector<8x128xf32>
    %259 = arith.mulf %210, %258 : vector<8x128xf32>
    %260 = vector.broadcast %9 : f32 to vector<8x128xf32>
    %261 = arith.mulf %213, %260 : vector<8x128xf32>
    %262 = arith.addf %259, %261 : vector<8x128xf32>
    %263 = vector.broadcast %10 : f32 to vector<8x128xf32>
    %264 = arith.mulf %216, %263 : vector<8x128xf32>
    %265 = arith.addf %262, %264 : vector<8x128xf32>
    %266 = vector.broadcast %11 : f32 to vector<8x128xf32>
    %267 = arith.mulf %219, %266 : vector<8x128xf32>
    %268 = arith.addf %265, %267 : vector<8x128xf32>
    %269 = vector.broadcast %34 : f32 to vector<8x128xf32>
    %270 = arith.addf %268, %269 : vector<8x128xf32>
    %cst_128 = arith.constant 0.000000e+00 : f32
    %271 = vector.broadcast %cst_128 : f32 to vector<8x128xf32>
    %272 = arith.maximumf %270, %271 : vector<8x128xf32>
    %c0_129 = arith.constant 0 : index
    %c2_130 = arith.constant 2 : index
    %273 = arith.index_cast %207 : i32 to index
    %c0_131 = arith.constant 0 : index
    %274 = vector.load %arg5[%c0_129, %c2_130, %273, %c0_131] : memref<1x8x16x128xf32, #tpu.memory_space<vmem>>, vector<1x1x8x128xf32>
    %275 = vector.shape_cast %274 : vector<1x1x8x128xf32> to vector<8x128xf32>
    %276 = vector.shape_cast %272 : vector<8x128xf32> to vector<1x1x8x128xf32>
    tpu.vector_store %arg5[%c0_129, %c2_130, %273, %c0_131], %276 {strides = array<i32>} : memref<1x8x16x128xf32, #tpu.memory_space<vmem>>, vector<1x1x8x128xf32>,
    %277 = vector.broadcast %12 : f32 to vector<8x128xf32>
    %278 = arith.mulf %210, %277 : vector<8x128xf32>
    %279 = vector.broadcast %13 : f32 to vector<8x128xf32>
    %280 = arith.mulf %213, %279 : vector<8x128xf32>
    %281 = arith.addf %278, %280 : vector<8x128xf32>
    %282 = vector.broadcast %14 : f32 to vector<8x128xf32>
    %283 = arith.mulf %216, %282 : vector<8x128xf32>
    %284 = arith.addf %281, %283 : vector<8x128xf32>
    %285 = vector.broadcast %15 : f32 to vector<8x128xf32>
    %286 = arith.mulf %219, %285 : vector<8x128xf32>
    %287 = arith.addf %284, %286 : vector<8x128xf32>
    %288 = vector.broadcast %35 : f32 to vector<8x128xf32>
    %289 = arith.addf %287, %288 : vector<8x128xf32>
    %cst_132 = arith.constant 0.000000e+00 : f32
    %290 = vector.broadcast %cst_132 : f32 to vector<8x128xf32>
    %291 = arith.maximumf %289, %290 : vector<8x128xf32>
    %c0_133 = arith.constant 0 : index
    %c3_134 = arith.constant 3 : index
    %292 = arith.index_cast %207 : i32 to index
    %c0_135 = arith.constant 0 : index
    %293 = vector.load %arg5[%c0_133, %c3_134, %292, %c0_135] : memref<1x8x16x128xf32, #tpu.memory_space<vmem>>, vector<1x1x8x128xf32>
    %294 = vector.shape_cast %293 : vector<1x1x8x128xf32> to vector<8x128xf32>
    %295 = vector.shape_cast %291 : vector<8x128xf32> to vector<1x1x8x128xf32>
    tpu.vector_store %arg5[%c0_133, %c3_134, %292, %c0_135], %295 {strides = array<i32>} : memref<1x8x16x128xf32, #tpu.memory_space<vmem>>, vector<1x1x8x128xf32>,
    %296 = vector.broadcast %16 : f32 to vector<8x128xf32>
    %297 = arith.mulf %210, %296 : vector<8x128xf32>
    %298 = vector.broadcast %17 : f32 to vector<8x128xf32>
    %299 = arith.mulf %213, %298 : vector<8x128xf32>
    %300 = arith.addf %297, %299 : vector<8x128xf32>
    %301 = vector.broadcast %18 : f32 to vector<8x128xf32>
    %302 = arith.mulf %216, %301 : vector<8x128xf32>
    %303 = arith.addf %300, %302 : vector<8x128xf32>
    %304 = vector.broadcast %19 : f32 to vector<8x128xf32>
    %305 = arith.mulf %219, %304 : vector<8x128xf32>
    %306 = arith.addf %303, %305 : vector<8x128xf32>
    %307 = vector.broadcast %36 : f32 to vector<8x128xf32>
    %308 = arith.addf %306, %307 : vector<8x128xf32>
    %cst_136 = arith.constant 0.000000e+00 : f32
    %309 = vector.broadcast %cst_136 : f32 to vector<8x128xf32>
    %310 = arith.maximumf %308, %309 : vector<8x128xf32>
    %c0_137 = arith.constant 0 : index
    %c4_138 = arith.constant 4 : index
    %311 = arith.index_cast %207 : i32 to index
    %c0_139 = arith.constant 0 : index
    %312 = vector.load %arg5[%c0_137, %c4_138, %311, %c0_139] : memref<1x8x16x128xf32, #tpu.memory_space<vmem>>, vector<1x1x8x128xf32>
    %313 = vector.shape_cast %312 : vector<1x1x8x128xf32> to vector<8x128xf32>
    %314 = vector.shape_cast %310 : vector<8x128xf32> to vector<1x1x8x128xf32>
    tpu.vector_store %arg5[%c0_137, %c4_138, %311, %c0_139], %314 {strides = array<i32>} : memref<1x8x16x128xf32, #tpu.memory_space<vmem>>, vector<1x1x8x128xf32>,
    %315 = vector.broadcast %20 : f32 to vector<8x128xf32>
    %316 = arith.mulf %210, %315 : vector<8x128xf32>
    %317 = vector.broadcast %21 : f32 to vector<8x128xf32>
    %318 = arith.mulf %213, %317 : vector<8x128xf32>
    %319 = arith.addf %316, %318 : vector<8x128xf32>
    %320 = vector.broadcast %22 : f32 to vector<8x128xf32>
    %321 = arith.mulf %216, %320 : vector<8x128xf32>
    %322 = arith.addf %319, %321 : vector<8x128xf32>
    %323 = vector.broadcast %23 : f32 to vector<8x128xf32>
    %324 = arith.mulf %219, %323 : vector<8x128xf32>
    %325 = arith.addf %322, %324 : vector<8x128xf32>
    %326 = vector.broadcast %37 : f32 to vector<8x128xf32>
    %327 = arith.addf %325, %326 : vector<8x128xf32>
    %cst_140 = arith.constant 0.000000e+00 : f32
    %328 = vector.broadcast %cst_140 : f32 to vector<8x128xf32>
    %329 = arith.maximumf %327, %328 : vector<8x128xf32>
    %c0_141 = arith.constant 0 : index
    %c5_142 = arith.constant 5 : index
    %330 = arith.index_cast %207 : i32 to index
    %c0_143 = arith.constant 0 : index
    %331 = vector.load %arg5[%c0_141, %c5_142, %330, %c0_143] : memref<1x8x16x128xf32, #tpu.memory_space<vmem>>, vector<1x1x8x128xf32>
    %332 = vector.shape_cast %331 : vector<1x1x8x128xf32> to vector<8x128xf32>
    %333 = vector.shape_cast %329 : vector<8x128xf32> to vector<1x1x8x128xf32>
    tpu.vector_store %arg5[%c0_141, %c5_142, %330, %c0_143], %333 {strides = array<i32>} : memref<1x8x16x128xf32, #tpu.memory_space<vmem>>, vector<1x1x8x128xf32>,
    %334 = vector.broadcast %24 : f32 to vector<8x128xf32>
    %335 = arith.mulf %210, %334 : vector<8x128xf32>
    %336 = vector.broadcast %25 : f32 to vector<8x128xf32>
    %337 = arith.mulf %213, %336 : vector<8x128xf32>
    %338 = arith.addf %335, %337 : vector<8x128xf32>
    %339 = vector.broadcast %26 : f32 to vector<8x128xf32>
    %340 = arith.mulf %216, %339 : vector<8x128xf32>
    %341 = arith.addf %338, %340 : vector<8x128xf32>
    %342 = vector.broadcast %27 : f32 to vector<8x128xf32>
    %343 = arith.mulf %219, %342 : vector<8x128xf32>
    %344 = arith.addf %341, %343 : vector<8x128xf32>
    %345 = vector.broadcast %38 : f32 to vector<8x128xf32>
    %346 = arith.addf %344, %345 : vector<8x128xf32>
    %cst_144 = arith.constant 0.000000e+00 : f32
    %347 = vector.broadcast %cst_144 : f32 to vector<8x128xf32>
    %348 = arith.maximumf %346, %347 : vector<8x128xf32>
    %c0_145 = arith.constant 0 : index
    %c6_146 = arith.constant 6 : index
    %349 = arith.index_cast %207 : i32 to index
    %c0_147 = arith.constant 0 : index
    %350 = vector.load %arg5[%c0_145, %c6_146, %349, %c0_147] : memref<1x8x16x128xf32, #tpu.memory_space<vmem>>, vector<1x1x8x128xf32>
    %351 = vector.shape_cast %350 : vector<1x1x8x128xf32> to vector<8x128xf32>
    %352 = vector.shape_cast %348 : vector<8x128xf32> to vector<1x1x8x128xf32>
    tpu.vector_store %arg5[%c0_145, %c6_146, %349, %c0_147], %352 {strides = array<i32>} : memref<1x8x16x128xf32, #tpu.memory_space<vmem>>, vector<1x1x8x128xf32>,
    %353 = vector.broadcast %28 : f32 to vector<8x128xf32>
    %354 = arith.mulf %210, %353 : vector<8x128xf32>
    %355 = vector.broadcast %29 : f32 to vector<8x128xf32>
    %356 = arith.mulf %213, %355 : vector<8x128xf32>
    %357 = arith.addf %354, %356 : vector<8x128xf32>
    %358 = vector.broadcast %30 : f32 to vector<8x128xf32>
    %359 = arith.mulf %216, %358 : vector<8x128xf32>
    %360 = arith.addf %357, %359 : vector<8x128xf32>
    %361 = vector.broadcast %31 : f32 to vector<8x128xf32>
    %362 = arith.mulf %219, %361 : vector<8x128xf32>
    %363 = arith.addf %360, %362 : vector<8x128xf32>
    %364 = vector.broadcast %39 : f32 to vector<8x128xf32>
    %365 = arith.addf %363, %364 : vector<8x128xf32>
    %cst_148 = arith.constant 0.000000e+00 : f32
    %366 = vector.broadcast %cst_148 : f32 to vector<8x128xf32>
    %367 = arith.maximumf %365, %366 : vector<8x128xf32>
    %c0_149 = arith.constant 0 : index
    %c7_150 = arith.constant 7 : index
    %368 = arith.index_cast %207 : i32 to index
    %c0_151 = arith.constant 0 : index
    %369 = vector.load %arg5[%c0_149, %c7_150, %368, %c0_151] : memref<1x8x16x128xf32, #tpu.memory_space<vmem>>, vector<1x1x8x128xf32>
    %370 = vector.shape_cast %369 : vector<1x1x8x128xf32> to vector<8x128xf32>
    %371 = vector.shape_cast %367 : vector<8x128xf32> to vector<1x1x8x128xf32>
    tpu.vector_store %arg5[%c0_149, %c7_150, %368, %c0_151], %371 {strides = array<i32>} : memref<1x8x16x128xf32, #tpu.memory_space<vmem>>, vector<1x1x8x128xf32>,
    %c2_i32 = arith.constant 2 : i32
    return
  }
  func.func @transform_0(%arg0: i32, %arg1: i32) -> (i32, i32, i32, i32) {
    %c0_i32 = arith.constant 0 : i32
    %c0_i32_0 = arith.constant 0 : i32
    %c0_i32_1 = arith.constant 0 : i32
    return %arg0, %c0_i32, %arg1, %c0_i32_0 : i32, i32, i32, i32
  }
  func.func @transform_1(%arg0: i32, %arg1: i32) -> (i32, i32) {
    %c0_i32 = arith.constant 0 : i32
    %c0_i32_0 = arith.constant 0 : i32
    %c0_i32_1 = arith.constant 0 : i32
    return %c0_i32, %c0_i32_0 : i32, i32
  }
  func.func @transform_2(%arg0: i32, %arg1: i32) -> i32 {
    %c0_i32 = arith.constant 0 : i32
    %c0_i32_0 = arith.constant 0 : i32
    return %c0_i32 : i32
  }
  func.func @transform_3(%arg0: i32, %arg1: i32) -> (i32, i32, i32, i32) {
    %c0_i32 = arith.constant 0 : i32
    %c0_i32_0 = arith.constant 0 : i32
    %c0_i32_1 = arith.constant 0 : i32
    return %arg0, %c0_i32, %arg1, %c0_i32_0 : i32, i32, i32, i32
  }
}

</mosaic_0001>

<llo_original>
// kernel: no_inplace_relu_forward.1
$region0: #{no_inplace_relu_forward.1}
  #allocation0 [shape = 'u32[]', space=smem, size = 0x4, offset = 0x4, fixed_abs, tag = 'smem constant byte address 0x4 - core index']
  #allocation1 [shape = 'u32[144,128]{1,0:T(1,128)}', space=vmem, size = 0x12000, scoped, tag = 'internal scratch']
  %s0 = inlined_call_operand.vmem [shape: f32[2,4,32,128], index: 0, kind: input, shape index: {}]
  %s1 = inlined_call_operand.vmem [shape: f32[8,4], index: 1, kind: input, shape index: {}]
  %s2 = inlined_call_operand.vmem [shape: f32[8], index: 2, kind: input, shape index: {}]
  %s3 = inlined_call_operand.vmem [shape: f32[2,8,32,128], index: 3, kind: output, shape index: {}]
  %s4 = sld [smem:[#allocation0]]
  $region125: #{no_inplace_relu_forward.1} parent=0
    _
  %s6 = ssub.s32 1, %s4
  %s7 = scalar_select 0, %s6, %s4
  $region1: #{no_inplace_relu_forward.1} parent=0
    #allocation2 [shape = 'u8[65536]{0}', space=vmem, size = 0x10000, scoped, tag = 'input window, operand 0']
    #allocation3 [shape = 'u8[4096]{0}', space=smem, size = 0x1000, scoped, tag = 'input window, operand 1, single buffered']
    #allocation4 [shape = 's32[2]{0}', space=sflag, size = 0x8, scoped, tag = 'scoped memory for no_inplace_relu_forward.1']
    #allocation5 [shape = 'u8[512]{0}', space=smem, size = 0x200, scoped, tag = 'input window, operand 2, single buffered']
    #allocation6 [shape = 's32[1]{0}', space=sflag, size = 0x4, scoped, tag = 'scoped memory for no_inplace_relu_forward.1']
    #allocation7 [shape = 'u8[131072]{0}', space=vmem, size = 0x20000, scoped, tag = 'output window, operand 0']
    %8 = vsyncpa [#allocation4], 0
    %9 = vsyncpa [#allocation6], 0
    loop: start=0, step=1, limit=6
    $region2: #{no_inplace_relu_forward.1} parent=1 // loop_pre_header
      _
    $region3: #{no_inplace_relu_forward.1} parent=1 // loop_header
      %s11 = sphi 0, %s15
      %p12 = scmp.ge.s32.totalorder %s11, 6
      %s18 = sphi 0, %s30
      %s19 = sphi 0, %s26
      %s20 = sphi 0, %s18
      %s21 = sphi 0, %s19
      %s22 = sphi 0, %s20
      %s23 = sphi 0, %s21
      %s35 = sphi 0, %s37
      %s38 = sphi 0, %s35
      %s39 = sphi 0, %s38
      %s55 = sphi 0, %s39
      %s59 = sphi 0, %s59
      %s61 = sphi 0, %s59
      %s62 = sphi 0, %s61
      %s76 = sphi 0, %s62
      %s80 = sphi 0, %s80
      %s82 = sphi 0, %s80
      %s83 = sphi 0, %s82
      %s97 = sphi 0, %s83
      %s105 = sphi 0, %s107
      %s108 = sphi 0, %s105
      %s109 = sphi 0, %s108
      %s125 = sphi 0, %s109
    $region4: #{no_inplace_relu_forward.1} parent=1 // loop_header_branch
      %14 = sbr.rel (%p12) target = $region8
    $region5: #{no_inplace_relu_forward.1} parent=1 // loop_body
      %s16 = ssub.s32 %s11, 1
      %s17 = ssub.s32 %s11, 2
      %s24 = sadd.s32 1, %s19
      %p25 = scmp.ge.s32.totalorder %s24, 2
      %s26 = scalar_select %p25, 0, %s24
      %s27 = sadd.s32 1, %s18
      %s28 = scalar_select %p25, %s27, %s18
      %p29 = scmp.ge.s32.totalorder %s28, 2
      %s30 = scalar_select %p29, 0, %s28
      %s31 = ssub.s32 %s18, %s30
      %s32 = ssub.s32 %s19, %s26
      %s33 = sor.u32 %s31, %s32
      %p34 = scmp.eq.s32.totalorder %s33, 0
      %s36 = sadd.s32 %s35, 1
      %s37 = scalar_select %p34, %s35, %s36
      %p40 = pneg %p34
      %p41 = scmp.eq.s32.totalorder %s11, 3
      %p42 = por %p40, %p41
      %p43 = scmp.ne.s32.totalorder %s35, %s38
      %p44 = scmp.eq.s32.totalorder %s11, 0
      %p45 = por %p43, %p44
      %p46 = scmp.ne.s32.totalorder %s35, %s38
      %p47 = scmp.eq.s32.totalorder %s16, 3
      %p48 = por %p46, %p47
      %p49 = scmp.ne.s32.totalorder %s38, %s39
      %p50 = scmp.eq.s32.totalorder %s16, 0
      %p51 = por %p49, %p50
      %p52 = scmp.ne.s32.totalorder %s38, %s39
      %p53 = scmp.eq.s32.totalorder %s17, 3
      %p54 = por %p52, %p53
      %p56 = scmp.ne.s32.totalorder %s39, %s55
      %p57 = scmp.eq.s32.totalorder %s17, 0
      %p58 = por %p56, %p57
      %s60 = sadd.s32 %s59, 1
      %p63 = scmp.eq.s32.totalorder %s11, 3
      %p64 = scmp.ne.s32.totalorder %s59, %s61
      %p65 = scmp.eq.s32.totalorder %s11, 0
      %p66 = por %p64, %p65
      %p67 = scmp.ne.s32.totalorder %s59, %s61
      %p68 = scmp.eq.s32.totalorder %s16, 3
      %p69 = por %p67, %p68
      %p70 = scmp.ne.s32.totalorder %s61, %s62
      %p71 = scmp.eq.s32.totalorder %s16, 0
      %p72 = por %p70, %p71
      %p73 = scmp.ne.s32.totalorder %s61, %s62
      %p74 = scmp.eq.s32.totalorder %s17, 3
      %p75 = por %p73, %p74
      %p77 = scmp.ne.s32.totalorder %s62, %s76
      %p78 = scmp.eq.s32.totalorder %s17, 0
      %p79 = por %p77, %p78
      %s81 = sadd.s32 %s80, 1
      %p84 = scmp.eq.s32.totalorder %s11, 3
      %p85 = scmp.ne.s32.totalorder %s80, %s82
      %p86 = scmp.eq.s32.totalorder %s11, 0
      %p87 = por %p85, %p86
      %p88 = scmp.ne.s32.totalorder %s80, %s82
      %p89 = scmp.eq.s32.totalorder %s16, 3
      %p90 = por %p88, %p89
      %p91 = scmp.ne.s32.totalorder %s82, %s83
      %p92 = scmp.eq.s32.totalorder %s16, 0
      %p93 = por %p91, %p92
      %p94 = scmp.ne.s32.totalorder %s82, %s83
      %p95 = scmp.eq.s32.totalorder %s17, 3
      %p96 = por %p94, %p95
      %p98 = scmp.ne.s32.totalorder %s83, %s97
      %p99 = scmp.eq.s32.totalorder %s17, 0
      %p100 = por %p98, %p99
      %s101 = ssub.s32 %s18, %s30
      %s102 = ssub.s32 %s19, %s26
      %s103 = sor.u32 %s101, %s102
      %p104 = scmp.eq.s32.totalorder %s103, 0
      %s106 = sadd.s32 %s105, 1
      %s107 = scalar_select %p104, %s105, %s106
      %p110 = pneg %p104
      %p111 = scmp.eq.s32.totalorder %s11, 3
      %p112 = por %p110, %p111
      %p113 = scmp.ne.s32.totalorder %s105, %s108
      %p114 = scmp.eq.s32.totalorder %s11, 0
      %p115 = por %p113, %p114
      %p116 = scmp.ne.s32.totalorder %s105, %s108
      %p117 = scmp.eq.s32.totalorder %s16, 3
      %p118 = por %p116, %p117
      %p119 = scmp.ne.s32.totalorder %s108, %s109
      %p120 = scmp.eq.s32.totalorder %s16, 0
      %p121 = por %p119, %p120
      %p122 = scmp.ne.s32.totalorder %s108, %s109
      %p123 = scmp.eq.s32.totalorder %s17, 3
      %p124 = por %p122, %p123
      %p126 = scmp.ne.s32.totalorder %s109, %s125
      %p127 = scmp.eq.s32.totalorder %s17, 0
      %p128 = por %p126, %p127
      %p129 = scmp.le.s32.totalorder 1, %s11
      %p130 = scmp.lt.s32.totalorder %s11, 5
      %p131 = pnand %p129, %p130
      %p132 = pneg %p131
      // Predicated region
      $region9: #{no_inplace_relu_forward.1} parent=5 // pred_check
        _
      $region10: #{no_inplace_relu_forward.1} parent=5 // pred_check_branch
        %134 = sbr.rel (%p131) target = $region12
      $region11: #{no_inplace_relu_forward.1} parent=5 // pred_region
        %s135 = ssub.s32 %s11, 1
        // Predicated region
        $region13: #{no_inplace_relu_forward.1} parent=11 // pred_check
          %p136 = pneg %p72
        $region14: #{no_inplace_relu_forward.1} parent=11 // pred_check_branch
          %138 = sbr.rel (%p136) target = $region16
        $region15: #{no_inplace_relu_forward.1} parent=11 // pred_region
          %s140 = ssub.s32 128, 128
          %141 = vsyncadd [#allocation4], %s140
          %s143 = sshll.u32 %s1, 4
          %s144 = int_to_ptr.vmem [resolvable:$true] %s143
          %146 = dma.vmem_to_smem %s144, 128, [#allocation3], [#allocation4]
        $region16: #{no_inplace_relu_forward.1} parent=11 // pred_fallthru
          _
        // Predicated region
        $region17: #{no_inplace_relu_forward.1} parent=11 // pred_check
          %p147 = pneg %p93
        $region18: #{no_inplace_relu_forward.1} parent=11 // pred_check_branch
          %149 = sbr.rel (%p147) target = $region20
        $region19: #{no_inplace_relu_forward.1} parent=11 // pred_region
          %s151 = ssub.s32 16, 16
          %152 = vsyncadd [#allocation6], %s151
          %s154 = sshll.u32 %s2, 4
          %s155 = int_to_ptr.vmem [resolvable:$true] %s154
          %157 = dma.vmem_to_smem %s155, 16, [#allocation5], [#allocation6]
        $region20: #{no_inplace_relu_forward.1} parent=11 // pred_fallthru
          _
      $region12: #{no_inplace_relu_forward.1} parent=5 // pred_fallthru
        _
      %p158 = scmp.lt.s32.totalorder %s11, 4
      // Predicated region
      $region21: #{no_inplace_relu_forward.1} parent=5 // pred_check
        %p159 = pneg %p158
      $region22: #{no_inplace_relu_forward.1} parent=5 // pred_check_branch
        %161 = sbr.rel (%p159) target = $region24
      $region23: #{no_inplace_relu_forward.1} parent=5 // pred_region
        // Predicated region
        $region25: #{no_inplace_relu_forward.1} parent=23 // pred_check
          %p162 = pneg %p45
        $region26: #{no_inplace_relu_forward.1} parent=23 // pred_check_branch
          %164 = sbr.rel (%p162) target = $region28
        $region27: #{no_inplace_relu_forward.1} parent=23 // pred_region
          %s165 = sand.u32 %s35, 1
          %s166 = sand.u32 %s35, 1
          %s167 = smul.addr %s166, 64
          %s168 = scalar_lea.vmem [#allocation2], %s167
          %s169 = smul.u32 2, %s19
          %s170 = smul.addr %s18, 16
          %s171 = sadd.s32 %s169, %s170
          %s172 = smul.addr %s171, 8
          %s173 = scalar_lea.vmem %s0, %s172
          // Predicated region
          $region29: #{no_inplace_relu_forward.1} parent=27 // pred_check
            _
          $region30: #{no_inplace_relu_forward.1} parent=27 // pred_check_branch
            %175 = sbr.rel (0) target = $region32
          $region31: #{no_inplace_relu_forward.1} parent=27 // pred_region
            // Predicated region
            $region33: #{no_inplace_relu_forward.1} parent=31 // pred_check
              _
            $region34: #{no_inplace_relu_forward.1} parent=31 // pred_check_branch
              %177 = sbr.rel (0) target = $region36
            $region35: #{no_inplace_relu_forward.1} parent=31 // pred_region
              // Predicated region
              $region48: #{no_inplace_relu_forward.1} parent=35 // pred_check
                _
              $region49: #{no_inplace_relu_forward.1} parent=35 // pred_check_branch
                %206 = sbr.rel (0) target = $region51
              $region50: #{no_inplace_relu_forward.1} parent=35 // pred_region
                loop: start=0, step=1, limit=1
                $region52: #{no_inplace_relu_forward.1} parent=50 // loop_pre_header
                  _
                $region53: #{no_inplace_relu_forward.1} parent=50 // loop_header
                  %s208 = sphi 0, %s212
                  %p209 = scmp.ge.s32.totalorder %s208, 1
                  %s213 = sphi %s173, %s173
                  %s214 = sphi %s168, %s168
                $region54: #{no_inplace_relu_forward.1} parent=50 // loop_header_branch
                  %211 = sbr.rel (%p209) target = $region58
                $region55: #{no_inplace_relu_forward.1} parent=50 // loop_body
                  %v215 = vld [vmem:[%s213] sm:$0xff]
                  %216 = vst [vmem:[%s214] sm:$0xff] %v215
                  %v217 = vld [vmem:[%s213 + $0x8] sm:$0xff]
                  %218 = vst [vmem:[%s214 + $0x8] sm:$0xff] %v217
                  %v219 = vld [vmem:[%s213 + $0x20] sm:$0xff]
                  %220 = vst [vmem:[%s214 + $0x10] sm:$0xff] %v219
                  %v221 = vld [vmem:[%s213 + $0x28] sm:$0xff]
                  %222 = vst [vmem:[%s214 + $0x18] sm:$0xff] %v221
                  %v223 = vld [vmem:[%s213 + $0x40] sm:$0xff]
                  %224 = vst [vmem:[%s214 + $0x20] sm:$0xff] %v223
                  %v225 = vld [vmem:[%s213 + $0x48] sm:$0xff]
                  %226 = vst [vmem:[%s214 + $0x28] sm:$0xff] %v225
                  %v227 = vld [vmem:[%s213 + $0x60] sm:$0xff]
                  %228 = vst [vmem:[%s214 + $0x30] sm:$0xff] %v227
                  %v229 = vld [vmem:[%s213 + $0x68] sm:$0xff]
                  %230 = vst [vmem:[%s214 + $0x38] sm:$0xff] %v229
                $region56: #{no_inplace_relu_forward.1} parent=50 // loop_footer
                  %s212 = sadd.s32 1, %s208
                $region57: #{no_inplace_relu_forward.1} parent=50 // loop_footer_branch
                  %207 = sbr.rel target = $region53
                $region58: #{no_inplace_relu_forward.1} parent=50 // loop_exit
                  _
              $region51: #{no_inplace_relu_forward.1} parent=35 // pred_fallthru
                _
              // Predicated region
              $region59: #{no_inplace_relu_forward.1} parent=35 // pred_check
                _
              $region60: #{no_inplace_relu_forward.1} parent=35 // pred_check_branch
                %232 = sbr.rel target = $region62
              $region61: #{no_inplace_relu_forward.1} parent=35 // pred_region
                _
              $region62: #{no_inplace_relu_forward.1} parent=35 // pred_fallthru
                _
            $region36: #{no_inplace_relu_forward.1} parent=31 // pred_fallthru
              _
            // Predicated region
            $region37: #{no_inplace_relu_forward.1} parent=31 // pred_check
              _
            $region38: #{no_inplace_relu_forward.1} parent=31 // pred_check_branch
              %179 = sbr.rel target = $region40
            $region39: #{no_inplace_relu_forward.1} parent=31 // pred_region
              loop: start=0, step=1, limit=1
              $region41: #{no_inplace_relu_forward.1} parent=39 // loop_pre_header
                _
              $region42: #{no_inplace_relu_forward.1} parent=39 // loop_header
                %s182 = sphi 0, %s186
                %p183 = scmp.ge.s32.totalorder %s182, 1
                %s187 = sphi %s173, %s173
                %s188 = sphi %s168, %s168
              $region43: #{no_inplace_relu_forward.1} parent=39 // loop_header_branch
                %185 = sbr.rel (%p183) target = $region47
              $region44: #{no_inplace_relu_forward.1} parent=39 // loop_body
                %v189 = vld [vmem:[%s187] sm:$0xff]
                %190 = vst [vmem:[%s188] sm:$0xff] %v189
                %v191 = vld [vmem:[%s187 + $0x8] sm:$0xff]
                %192 = vst [vmem:[%s188 + $0x8] sm:$0xff] %v191
                %v193 = vld [vmem:[%s187 + $0x20] sm:$0xff]
                %194 = vst [vmem:[%s188 + $0x10] sm:$0xff] %v193
                %v195 = vld [vmem:[%s187 + $0x28] sm:$0xff]
                %196 = vst [vmem:[%s188 + $0x18] sm:$0xff] %v195
                %v197 = vld [vmem:[%s187 + $0x40] sm:$0xff]
                %198 = vst [vmem:[%s188 + $0x20] sm:$0xff] %v197
                %v199 = vld [vmem:[%s187 + $0x48] sm:$0xff]
                %200 = vst [vmem:[%s188 + $0x28] sm:$0xff] %v199
                %v201 = vld [vmem:[%s187 + $0x60] sm:$0xff]
                %202 = vst [vmem:[%s188 + $0x30] sm:$0xff] %v201
                %v203 = vld [vmem:[%s187 + $0x68] sm:$0xff]
                %204 = vst [vmem:[%s188 + $0x38] sm:$0xff] %v203
              $region45: #{no_inplace_relu_forward.1} parent=39 // loop_footer
                %s186 = sadd.s32 1, %s182
              $region46: #{no_inplace_relu_forward.1} parent=39 // loop_footer_branch
                %181 = sbr.rel target = $region42
              $region47: #{no_inplace_relu_forward.1} parent=39 // loop_exit
                _
            $region40: #{no_inplace_relu_forward.1} parent=31 // pred_fallthru
              _
          $region32: #{no_inplace_relu_forward.1} parent=27 // pred_fallthru
            _
          %233 = vnop
        $region28: #{no_inplace_relu_forward.1} parent=23 // pred_fallthru
          _
      $region24: #{no_inplace_relu_forward.1} parent=5 // pred_fallthru
        _
      %p234 = scmp.le.s32.totalorder 1, %s11
      %p235 = scmp.lt.s32.totalorder %s11, 5
      %p236 = pnand %p234, %p235
      %p237 = pneg %p236
      // Predicated region
      $region63: #{no_inplace_relu_forward.1} parent=5 // pred_check
        _
      $region64: #{no_inplace_relu_forward.1} parent=5 // pred_check_branch
        %239 = sbr.rel (%p236) target = $region66
      $region65: #{no_inplace_relu_forward.1} parent=5 // pred_region
        %s240 = ssub.s32 %s11, 1
        %s241 = sand.u32 %s38, 1
        %s242 = sand.u32 %s38, 1
        %s243 = smul.addr %s242, 64
        %s244 = scalar_lea.vmem [#allocation2], %s243
        // Predicated region
        $region67: #{no_inplace_relu_forward.1} parent=65 // pred_check
          %p245 = pneg %p51
        $region68: #{no_inplace_relu_forward.1} parent=65 // pred_check_branch
          %247 = sbr.rel (%p245) target = $region70
        $region69: #{no_inplace_relu_forward.1} parent=65 // pred_region
          _
        $region70: #{no_inplace_relu_forward.1} parent=65 // pred_fallthru
          _
        // Predicated region
        $region71: #{no_inplace_relu_forward.1} parent=65 // pred_check
          %p248 = pneg %p72
        $region72: #{no_inplace_relu_forward.1} parent=65 // pred_check_branch
          %250 = sbr.rel (%p248) target = $region74
        $region73: #{no_inplace_relu_forward.1} parent=65 // pred_region
          %251 = dma.done [#allocation4], 128
        $region74: #{no_inplace_relu_forward.1} parent=65 // pred_fallthru
          _
        // Predicated region
        $region75: #{no_inplace_relu_forward.1} parent=65 // pred_check
          %p252 = pneg %p93
        $region76: #{no_inplace_relu_forward.1} parent=65 // pred_check_branch
          %254 = sbr.rel (%p252) target = $region78
        $region77: #{no_inplace_relu_forward.1} parent=65 // pred_region
          %255 = dma.done [#allocation6], 16
        $region78: #{no_inplace_relu_forward.1} parent=65 // pred_fallthru
          _
        %256 = sfence
        %s257 = sand.u32 %s38, 1
        %s258 = sand.u32 %s38, 1
        %s259 = smul.addr %s258, 64
        %s260 = scalar_lea.vmem [#allocation2], %s259
        %p261 = pneg %p51
        %p262 = pneg %p48
        %p263 = pneg %p72
        %p264 = pneg %p69
        %p265 = pneg %p93
        %p266 = pneg %p90
        %p267 = pneg %p121
        %p268 = pneg %p118
        %s269 = sand.u32 %s108, 1
        %s270 = sand.u32 %s108, 1
        %s271 = smul.addr %s270, 128
        %s272 = scalar_lea.vmem [#allocation7], %s271
        %s273 = smul.u32 2, %s21
        %s274 = smul.u32 2, %s21
        %s275 = sld [smem:[#allocation3]]
        %s276 = sld [smem:[#allocation3 + $0x1]]
        %s277 = sld [smem:[#allocation3 + $0x2]]
        %s278 = sld [smem:[#allocation3 + $0x3]]
        %s279 = sld [smem:[#allocation3 + $0x80]]
        %s280 = sld [smem:[#allocation3 + $0x81]]
        %s281 = sld [smem:[#allocation3 + $0x82]]
        %s282 = sld [smem:[#allocation3 + $0x83]]
        %s283 = sld [smem:[#allocation3 + $0x100]]
        %s284 = sld [smem:[#allocation3 + $0x101]]
        %s285 = sld [smem:[#allocation3 + $0x102]]
        %s286 = sld [smem:[#allocation3 + $0x103]]
        %s287 = sld [smem:[#allocation3 + $0x180]]
        %s288 = sld [smem:[#allocation3 + $0x181]]
        %s289 = sld [smem:[#allocation3 + $0x182]]
        %s290 = sld [smem:[#allocation3 + $0x183]]
        %s291 = sld [smem:[#allocation3 + $0x200]]
        %s292 = sld [smem:[#allocation3 + $0x201]]
        %s293 = sld [smem:[#allocation3 + $0x202]]
        %s294 = sld [smem:[#allocation3 + $0x203]]
        %s295 = sld [smem:[#allocation3 + $0x280]]
        %s296 = sld [smem:[#allocation3 + $0x281]]
        %s297 = sld [smem:[#allocation3 + $0x282]]
        %s298 = sld [smem:[#allocation3 + $0x283]]
        %s299 = sld [smem:[#allocation3 + $0x300]]
        %s300 = sld [smem:[#allocation3 + $0x301]]
        %s301 = sld [smem:[#allocation3 + $0x302]]
        %s302 = sld [smem:[#allocation3 + $0x303]]
        %s303 = sld [smem:[#allocation3 + $0x380]]
        %s304 = sld [smem:[#allocation3 + $0x381]]
        %s305 = sld [smem:[#allocation3 + $0x382]]
        %s306 = sld [smem:[#allocation3 + $0x383]]
        %s307 = sld [smem:[#allocation5]]
        %s308 = sld [smem:[#allocation5 + $0x1]]
        %s309 = sld [smem:[#allocation5 + $0x2]]
        %s310 = sld [smem:[#allocation5 + $0x3]]
        %s311 = sld [smem:[#allocation5 + $0x4]]
        %s312 = sld [smem:[#allocation5 + $0x5]]
        %s313 = sld [smem:[#allocation5 + $0x6]]
        %s314 = sld [smem:[#allocation5 + $0x7]]
        %v315 = vld [vmem:[%s244] sm:$0xff]
        %s316 = sadd.s32 0, 16
        %s317 = scalar_lea.vmem %s244, %s316 [#allocation2]
        %v318 = vld [vmem:[%s317] sm:$0xff]
        %s319 = sadd.s32 0, 32
        %s320 = scalar_lea.vmem %s244, %s319 [#allocation2]
        %v321 = vld [vmem:[%s320] sm:$0xff]
        %s322 = sadd.s32 0, 48
        %s323 = scalar_lea.vmem %s244, %s322 [#allocation2]
        %v324 = vld [vmem:[%s323] sm:$0xff]
        %v325 = vstv %s275
        %v326 = vmul.f32 %v315, %v325
        %v327 = vstv %s276
        %v328 = vmul.f32 %v318, %v327
        %v329 = vadd.f32 %v326, %v328
        %v330 = vstv %s277
        %v331 = vmul.f32 %v321, %v330
        %v332 = vadd.f32 %v329, %v331
        %v333 = vstv %s278
        %v334 = vmul.f32 %v324, %v333
        %v335 = vadd.f32 %v332, %v334
        %v336 = vstv %s307
        %v337 = vadd.f32 %v335, %v336
        %v338 = vmax.f32 %v337, 0.0
        %339 = vst [vmem:[%s272] sm:$0xff] %v338
        %v340 = vstv %s279
        %v341 = vmul.f32 %v315, %v340
        %v342 = vstv %s280
        %v343 = vmul.f32 %v318, %v342
        %v344 = vadd.f32 %v341, %v343
        %v345 = vstv %s281
        %v346 = vmul.f32 %v321, %v345
        %v347 = vadd.f32 %v344, %v346
        %v348 = vstv %s282
        %v349 = vmul.f32 %v324, %v348
        %v350 = vadd.f32 %v347, %v349
        %v351 = vstv %s308
        %v352 = vadd.f32 %v350, %v351
        %v353 = vmax.f32 %v352, 0.0
        %s354 = scalar_lea.vmem %s272, %s316 [#allocation7]
        %355 = vst [vmem:[%s354] sm:$0xff] %v353
        %v356 = vstv %s283
        %v357 = vmul.f32 %v315, %v356
        %v358 = vstv %s284
        %v359 = vmul.f32 %v318, %v358
        %v360 = vadd.f32 %v357, %v359
        %v361 = vstv %s285
        %v362 = vmul.f32 %v321, %v361
        %v363 = vadd.f32 %v360, %v362
        %v364 = vstv %s286
        %v365 = vmul.f32 %v324, %v364
        %v366 = vadd.f32 %v363, %v365
        %v367 = vstv %s309
        %v368 = vadd.f32 %v366, %v367
        %v369 = vmax.f32 %v368, 0.0
        %s370 = scalar_lea.vmem %s272, %s319 [#allocation7]
        %371 = vst [vmem:[%s370] sm:$0xff] %v369
        %v372 = vstv %s287
        %v373 = vmul.f32 %v315, %v372
        %v374 = vstv %s288
        %v375 = vmul.f32 %v318, %v374
        %v376 = vadd.f32 %v373, %v375
        %v377 = vstv %s289
        %v378 = vmul.f32 %v321, %v377
        %v379 = vadd.f32 %v376, %v378
        %v380 = vstv %s290
        %v381 = vmul.f32 %v324, %v380
        %v382 = vadd.f32 %v379, %v381
        %v383 = vstv %s310
        %v384 = vadd.f32 %v382, %v383
        %v385 = vmax.f32 %v384, 0.0
        %s386 = scalar_lea.vmem %s272, %s322 [#allocation7]
        %387 = vst [vmem:[%s386] sm:$0xff] %v385
        %v388 = vstv %s291
        %v389 = vmul.f32 %v315, %v388
        %v390 = vstv %s292
        %v391 = vmul.f32 %v318, %v390
        %v392 = vadd.f32 %v389, %v391
        %v393 = vstv %s293
        %v394 = vmul.f32 %v321, %v393
        %v395 = vadd.f32 %v392, %v394
        %v396 = vstv %s294
        %v397 = vmul.f32 %v324, %v396
        %v398 = vadd.f32 %v395, %v397
        %v399 = vstv %s311
        %v400 = vadd.f32 %v398, %v399
        %v401 = vmax.f32 %v400, 0.0
        %s402 = sadd.s32 0, 64
        %s403 = scalar_lea.vmem %s272, %s402 [#allocation7]
        %404 = vst [vmem:[%s403] sm:$0xff] %v401
        %v405 = vstv %s295
        %v406 = vmul.f32 %v315, %v405
        %v407 = vstv %s296
        %v408 = vmul.f32 %v318, %v407
        %v409 = vadd.f32 %v406, %v408
        %v410 = vstv %s297
        %v411 = vmul.f32 %v321, %v410
        %v412 = vadd.f32 %v409, %v411
        %v413 = vstv %s298
        %v414 = vmul.f32 %v324, %v413
        %v415 = vadd.f32 %v412, %v414
        %v416 = vstv %s312
        %v417 = vadd.f32 %v415, %v416
        %v418 = vmax.f32 %v417, 0.0
        %s419 = sadd.s32 0, 80
        %s420 = scalar_lea.vmem %s272, %s419 [#allocation7]
        %421 = vst [vmem:[%s420] sm:$0xff] %v418
        %v422 = vstv %s299
        %v423 = vmul.f32 %v315, %v422
        %v424 = vstv %s300
        %v425 = vmul.f32 %v318, %v424
        %v426 = vadd.f32 %v423, %v425
        %v427 = vstv %s301
        %v428 = vmul.f32 %v321, %v427
        %v429 = vadd.f32 %v426, %v428
        %v430 = vstv %s302
        %v431 = vmul.f32 %v324, %v430
        %v432 = vadd.f32 %v429, %v431
        %v433 = vstv %s313
        %v434 = vadd.f32 %v432, %v433
        %v435 = vmax.f32 %v434, 0.0
        %s436 = sadd.s32 0, 96
        %s437 = scalar_lea.vmem %s272, %s436 [#allocation7]
        %438 = vst [vmem:[%s437] sm:$0xff] %v435
        %v439 = vstv %s303
        %v440 = vmul.f32 %v315, %v439
        %v441 = vstv %s304
        %v442 = vmul.f32 %v318, %v441
        %v443 = vadd.f32 %v440, %v442
        %v444 = vstv %s305
        %v445 = vmul.f32 %v321, %v444
        %v446 = vadd.f32 %v443, %v445
        %v447 = vstv %s306
        %v448 = vmul.f32 %v324, %v447
        %v449 = vadd.f32 %v446, %v448
        %v450 = vstv %s314
        %v451 = vadd.f32 %v449, %v450
        %v452 = vmax.f32 %v451, 0.0
        %s453 = sadd.s32 0, 112
        %s454 = scalar_lea.vmem %s272, %s453 [#allocation7]
        %455 = vst [vmem:[%s454] sm:$0xff] %v452
        %s456 = scalar_lea.vmem %s244, 8 [#allocation2]
        %v457 = vld [vmem:[%s456] sm:$0xff]
        %s458 = sadd.s32 8, 16
        %s459 = scalar_lea.vmem %s244, %s458 [#allocation2]
        %v460 = vld [vmem:[%s459] sm:$0xff]
        %s461 = sadd.s32 8, 32
        %s462 = scalar_lea.vmem %s244, %s461 [#allocation2]
        %v463 = vld [vmem:[%s462] sm:$0xff]
        %s464 = sadd.s32 8, 48
        %s465 = scalar_lea.vmem %s244, %s464 [#allocation2]
        %v466 = vld [vmem:[%s465] sm:$0xff]
        %v467 = vmul.f32 %v457, %v325
        %v468 = vmul.f32 %v460, %v327
        %v469 = vadd.f32 %v467, %v468
        %v470 = vmul.f32 %v463, %v330
        %v471 = vadd.f32 %v469, %v470
        %v472 = vmul.f32 %v466, %v333
        %v473 = vadd.f32 %v471, %v472
        %v474 = vadd.f32 %v473, %v336
        %v475 = vmax.f32 %v474, 0.0
        %s476 = scalar_lea.vmem %s272, 8 [#allocation7]
        %477 = vst [vmem:[%s476] sm:$0xff] %v475
        %v478 = vmul.f32 %v457, %v340
        %v479 = vmul.f32 %v460, %v342
        %v480 = vadd.f32 %v478, %v479
        %v481 = vmul.f32 %v463, %v345
        %v482 = vadd.f32 %v480, %v481
        %v483 = vmul.f32 %v466, %v348
        %v484 = vadd.f32 %v482, %v483
        %v485 = vadd.f32 %v484, %v351
        %v486 = vmax.f32 %v485, 0.0
        %s487 = scalar_lea.vmem %s272, %s458 [#allocation7]
        %488 = vst [vmem:[%s487] sm:$0xff] %v486
        %v489 = vmul.f32 %v457, %v356
        %v490 = vmul.f32 %v460, %v358
        %v491 = vadd.f32 %v489, %v490
        %v492 = vmul.f32 %v463, %v361
        %v493 = vadd.f32 %v491, %v492
        %v494 = vmul.f32 %v466, %v364
        %v495 = vadd.f32 %v493, %v494
        %v496 = vadd.f32 %v495, %v367
        %v497 = vmax.f32 %v496, 0.0
        %s498 = scalar_lea.vmem %s272, %s461 [#allocation7]
        %499 = vst [vmem:[%s498] sm:$0xff] %v497
        %v500 = vmul.f32 %v457, %v372
        %v501 = vmul.f32 %v460, %v374
        %v502 = vadd.f32 %v500, %v501
        %v503 = vmul.f32 %v463, %v377
        %v504 = vadd.f32 %v502, %v503
        %v505 = vmul.f32 %v466, %v380
        %v506 = vadd.f32 %v504, %v505
        %v507 = vadd.f32 %v506, %v383
        %v508 = vmax.f32 %v507, 0.0
        %s509 = scalar_lea.vmem %s272, %s464 [#allocation7]
        %510 = vst [vmem:[%s509] sm:$0xff] %v508
        %v511 = vmul.f32 %v457, %v388
        %v512 = vmul.f32 %v460, %v390
        %v513 = vadd.f32 %v511, %v512
        %v514 = vmul.f32 %v463, %v393
        %v515 = vadd.f32 %v513, %v514
        %v516 = vmul.f32 %v466, %v396
        %v517 = vadd.f32 %v515, %v516
        %v518 = vadd.f32 %v517, %v399
        %v519 = vmax.f32 %v518, 0.0
        %s520 = sadd.s32 8, 64
        %s521 = scalar_lea.vmem %s272, %s520 [#allocation7]
        %522 = vst [vmem:[%s521] sm:$0xff] %v519
        %v523 = vmul.f32 %v457, %v405
        %v524 = vmul.f32 %v460, %v407
        %v525 = vadd.f32 %v523, %v524
        %v526 = vmul.f32 %v463, %v410
        %v527 = vadd.f32 %v525, %v526
        %v528 = vmul.f32 %v466, %v413
        %v529 = vadd.f32 %v527, %v528
        %v530 = vadd.f32 %v529, %v416
        %v531 = vmax.f32 %v530, 0.0
        %s532 = sadd.s32 8, 80
        %s533 = scalar_lea.vmem %s272, %s532 [#allocation7]
        %534 = vst [vmem:[%s533] sm:$0xff] %v531
        %v535 = vmul.f32 %v457, %v422
        %v536 = vmul.f32 %v460, %v424
        %v537 = vadd.f32 %v535, %v536
        %v538 = vmul.f32 %v463, %v427
        %v539 = vadd.f32 %v537, %v538
        %v540 = vmul.f32 %v466, %v430
        %v541 = vadd.f32 %v539, %v540
        %v542 = vadd.f32 %v541, %v433
        %v543 = vmax.f32 %v542, 0.0
        %s544 = sadd.s32 8, 96
        %s545 = scalar_lea.vmem %s272, %s544 [#allocation7]
        %546 = vst [vmem:[%s545] sm:$0xff] %v543
        %v547 = vmul.f32 %v457, %v439
        %v548 = vmul.f32 %v460, %v441
        %v549 = vadd.f32 %v547, %v548
        %v550 = vmul.f32 %v463, %v444
        %v551 = vadd.f32 %v549, %v550
        %v552 = vmul.f32 %v466, %v447
        %v553 = vadd.f32 %v551, %v552
        %v554 = vadd.f32 %v553, %v450
        %v555 = vmax.f32 %v554, 0.0
        %s556 = sadd.s32 8, 112
        %s557 = scalar_lea.vmem %s272, %s556 [#allocation7]
        %558 = vst [vmem:[%s557] sm:$0xff] %v555
        %s559 = sand.u32 %s108, 1
        %s560 = sand.u32 %s108, 1
        %s561 = smul.addr %s560, 128
        %s562 = scalar_lea.vmem [#allocation7], %s561
        // Predicated region
        $region79: #{no_inplace_relu_forward.1} parent=65 // pred_check
          %p563 = pneg %p118
        $region80: #{no_inplace_relu_forward.1} parent=65 // pred_check_branch
          %565 = sbr.rel (%p563) target = $region82
        $region81: #{no_inplace_relu_forward.1} parent=65 // pred_region
          %s566 = smul.u32 2, %s21
          %s567 = smul.addr %s20, 32
          %s568 = sadd.s32 %s566, %s567
          %s569 = smul.addr %s568, 8
          %s570 = scalar_lea.vmem %s3, %s569
          // Predicated region
          $region83: #{no_inplace_relu_forward.1} parent=81 // pred_check
            _
          $region84: #{no_inplace_relu_forward.1} parent=81 // pred_check_branch
            %572 = sbr.rel (0) target = $region86
          $region85: #{no_inplace_relu_forward.1} parent=81 // pred_region
            // Predicated region
            $region87: #{no_inplace_relu_forward.1} parent=85 // pred_check
              _
            $region88: #{no_inplace_relu_forward.1} parent=85 // pred_check_branch
              %574 = sbr.rel (0) target = $region90
            $region89: #{no_inplace_relu_forward.1} parent=85 // pred_region
              // Predicated region
              $region102: #{no_inplace_relu_forward.1} parent=89 // pred_check
                _
              $region103: #{no_inplace_relu_forward.1} parent=89 // pred_check_branch
                %619 = sbr.rel (0) target = $region105
              $region104: #{no_inplace_relu_forward.1} parent=89 // pred_region
                loop: start=0, step=1, limit=1
                $region106: #{no_inplace_relu_forward.1} parent=104 // loop_pre_header
                  _
                $region107: #{no_inplace_relu_forward.1} parent=104 // loop_header
                  %s621 = sphi 0, %s625
                  %p622 = scmp.ge.s32.totalorder %s621, 1
                  %s626 = sphi %s562, %s562
                  %s627 = sphi %s570, %s570
                $region108: #{no_inplace_relu_forward.1} parent=104 // loop_header_branch
                  %624 = sbr.rel (%p622) target = $region112
                $region109: #{no_inplace_relu_forward.1} parent=104 // loop_body
                  %v628 = vld [vmem:[%s626] sm:$0xff]
                  %629 = vst [vmem:[%s627] sm:$0xff] %v628
                  %v630 = vld [vmem:[%s626 + $0x8] sm:$0xff]
                  %631 = vst [vmem:[%s627 + $0x8] sm:$0xff] %v630
                  %v632 = vld [vmem:[%s626 + $0x10] sm:$0xff]
                  %633 = vst [vmem:[%s627 + $0x20] sm:$0xff] %v632
                  %v634 = vld [vmem:[%s626 + $0x18] sm:$0xff]
                  %635 = vst [vmem:[%s627 + $0x28] sm:$0xff] %v634
                  %v636 = vld [vmem:[%s626 + $0x20] sm:$0xff]
                  %637 = vst [vmem:[%s627 + $0x40] sm:$0xff] %v636
                  %v638 = vld [vmem:[%s626 + $0x28] sm:$0xff]
                  %639 = vst [vmem:[%s627 + $0x48] sm:$0xff] %v638
                  %v640 = vld [vmem:[%s626 + $0x30] sm:$0xff]
                  %641 = vst [vmem:[%s627 + $0x60] sm:$0xff] %v640
                  %v642 = vld [vmem:[%s626 + $0x38] sm:$0xff]
                  %643 = vst [vmem:[%s627 + $0x68] sm:$0xff] %v642
                  %v644 = vld [vmem:[%s626 + $0x40] sm:$0xff]
                  %645 = vst [vmem:[%s627 + $0x80] sm:$0xff] %v644
                  %v646 = vld [vmem:[%s626 + $0x48] sm:$0xff]
                  %647 = vst [vmem:[%s627 + $0x88] sm:$0xff] %v646
                  %v648 = vld [vmem:[%s626 + $0x50] sm:$0xff]
                  %649 = vst [vmem:[%s627 + $0xa0] sm:$0xff] %v648
                  %v650 = vld [vmem:[%s626 + $0x58] sm:$0xff]
                  %651 = vst [vmem:[%s627 + $0xa8] sm:$0xff] %v650
                  %v652 = vld [vmem:[%s626 + $0x60] sm:$0xff]
                  %653 = vst [vmem:[%s627 + $0xc0] sm:$0xff] %v652
                  %v654 = vld [vmem:[%s626 + $0x68] sm:$0xff]
                  %655 = vst [vmem:[%s627 + $0xc8] sm:$0xff] %v654
                  %v656 = vld [vmem:[%s626 + $0x70] sm:$0xff]
                  %657 = vst [vmem:[%s627 + $0xe0] sm:$0xff] %v656
                  %v658 = vld [vmem:[%s626 + $0x78] sm:$0xff]
                  %659 = vst [vmem:[%s627 + $0xe8] sm:$0xff] %v658
                $region110: #{no_inplace_relu_forward.1} parent=104 // loop_footer
                  %s625 = sadd.s32 1, %s621
                $region111: #{no_inplace_relu_forward.1} parent=104 // loop_footer_branch
                  %620 = sbr.rel target = $region107
                $region112: #{no_inplace_relu_forward.1} parent=104 // loop_exit
                  _
              $region105: #{no_inplace_relu_forward.1} parent=89 // pred_fallthru
                _
              // Predicated region
              $region113: #{no_inplace_relu_forward.1} parent=89 // pred_check
                _
              $region114: #{no_inplace_relu_forward.1} parent=89 // pred_check_branch
                %661 = sbr.rel target = $region116
              $region115: #{no_inplace_relu_forward.1} parent=89 // pred_region
                _
              $region116: #{no_inplace_relu_forward.1} parent=89 // pred_fallthru
                _
            $region90: #{no_inplace_relu_forward.1} parent=85 // pred_fallthru
              _
            // Predicated region
            $region91: #{no_inplace_relu_forward.1} parent=85 // pred_check
              _
            $region92: #{no_inplace_relu_forward.1} parent=85 // pred_check_branch
              %576 = sbr.rel target = $region94
            $region93: #{no_inplace_relu_forward.1} parent=85 // pred_region
              loop: start=0, step=1, limit=1
              $region95: #{no_inplace_relu_forward.1} parent=93 // loop_pre_header
                _
              $region96: #{no_inplace_relu_forward.1} parent=93 // loop_header
                %s579 = sphi 0, %s583
                %p580 = scmp.ge.s32.totalorder %s579, 1
                %s584 = sphi %s562, %s562
                %s585 = sphi %s570, %s570
              $region97: #{no_inplace_relu_forward.1} parent=93 // loop_header_branch
                %582 = sbr.rel (%p580) target = $region101
              $region98: #{no_inplace_relu_forward.1} parent=93 // loop_body
                %v586 = vld [vmem:[%s584] sm:$0xff]
                %587 = vst [vmem:[%s585] sm:$0xff] %v586
                %v588 = vld [vmem:[%s584 + $0x8] sm:$0xff]
                %589 = vst [vmem:[%s585 + $0x8] sm:$0xff] %v588
                %v590 = vld [vmem:[%s584 + $0x10] sm:$0xff]
                %591 = vst [vmem:[%s585 + $0x20] sm:$0xff] %v590
                %v592 = vld [vmem:[%s584 + $0x18] sm:$0xff]
                %593 = vst [vmem:[%s585 + $0x28] sm:$0xff] %v592
                %v594 = vld [vmem:[%s584 + $0x20] sm:$0xff]
                %595 = vst [vmem:[%s585 + $0x40] sm:$0xff] %v594
                %v596 = vld [vmem:[%s584 + $0x28] sm:$0xff]
                %597 = vst [vmem:[%s585 + $0x48] sm:$0xff] %v596
                %v598 = vld [vmem:[%s584 + $0x30] sm:$0xff]
                %599 = vst [vmem:[%s585 + $0x60] sm:$0xff] %v598
                %v600 = vld [vmem:[%s584 + $0x38] sm:$0xff]
                %601 = vst [vmem:[%s585 + $0x68] sm:$0xff] %v600
                %v602 = vld [vmem:[%s584 + $0x40] sm:$0xff]
                %603 = vst [vmem:[%s585 + $0x80] sm:$0xff] %v602
                %v604 = vld [vmem:[%s584 + $0x48] sm:$0xff]
                %605 = vst [vmem:[%s585 + $0x88] sm:$0xff] %v604
                %v606 = vld [vmem:[%s584 + $0x50] sm:$0xff]
                %607 = vst [vmem:[%s585 + $0xa0] sm:$0xff] %v606
                %v608 = vld [vmem:[%s584 + $0x58] sm:$0xff]
                %609 = vst [vmem:[%s585 + $0xa8] sm:$0xff] %v608
                %v610 = vld [vmem:[%s584 + $0x60] sm:$0xff]
                %611 = vst [vmem:[%s585 + $0xc0] sm:$0xff] %v610
                %v612 = vld [vmem:[%s584 + $0x68] sm:$0xff]
                %613 = vst [vmem:[%s585 + $0xc8] sm:$0xff] %v612
                %v614 = vld [vmem:[%s584 + $0x70] sm:$0xff]
                %615 = vst [vmem:[%s585 + $0xe0] sm:$0xff] %v614
                %v616 = vld [vmem:[%s584 + $0x78] sm:$0xff]
                %617 = vst [vmem:[%s585 + $0xe8] sm:$0xff] %v616
              $region99: #{no_inplace_relu_forward.1} parent=93 // loop_footer
                %s583 = sadd.s32 1, %s579
              $region100: #{no_inplace_relu_forward.1} parent=93 // loop_footer_branch
                %578 = sbr.rel target = $region96
              $region101: #{no_inplace_relu_forward.1} parent=93 // loop_exit
                _
            $region94: #{no_inplace_relu_forward.1} parent=85 // pred_fallthru
              _
          $region86: #{no_inplace_relu_forward.1} parent=81 // pred_fallthru
            _
          %662 = vnop
        $region82: #{no_inplace_relu_forward.1} parent=65 // pred_fallthru
          _
      $region66: #{no_inplace_relu_forward.1} parent=5 // pred_fallthru
        _
      %p663 = scmp.le.s32.totalorder 2, %s11
      // Predicated region
      $region117: #{no_inplace_relu_forward.1} parent=5 // pred_check
        %p664 = pneg %p663
      $region118: #{no_inplace_relu_forward.1} parent=5 // pred_check_branch
        %666 = sbr.rel (%p664) target = $region120
      $region119: #{no_inplace_relu_forward.1} parent=5 // pred_region
        %s667 = ssub.s32 %s11, 2
        // Predicated region
        $region121: #{no_inplace_relu_forward.1} parent=119 // pred_check
          %p668 = pneg %p124
        $region122: #{no_inplace_relu_forward.1} parent=119 // pred_check_branch
          %670 = sbr.rel (%p668) target = $region124
        $region123: #{no_inplace_relu_forward.1} parent=119 // pred_region
          %s671 = sand.u32 %s109, 1
          %s672 = sand.u32 %s109, 1
          %s673 = smul.addr %s672, 128
          %s674 = scalar_lea.vmem [#allocation7], %s673
        $region124: #{no_inplace_relu_forward.1} parent=119 // pred_fallthru
          _
      $region120: #{no_inplace_relu_forward.1} parent=5 // pred_fallthru
        _
    $region6: #{no_inplace_relu_forward.1} parent=1 // loop_footer
      %s15 = sadd.s32 1, %s11
    $region7: #{no_inplace_relu_forward.1} parent=1 // loop_footer_branch
      %10 = sbr.rel target = $region3
    $region8: #{no_inplace_relu_forward.1} parent=1 // loop_exit
      _
    %675 = vsyncpa [#allocation4], 1
    %s676 = scalar_lea.sflag [#allocation4], 1
    %677 = vsyncpa %s676, 1
    %678 = vsyncpa [#allocation6], 1

</llo_original>
